<compile_context>
chip_gen: v6e
topology: v6e:2x2x1
jax: 0.10.0
libtpu: 0.0.40
codegen_flags: <defaults>
</compile_context>

<pallas_src>
import functools

import jax
import jax.numpy as jnp
from jax.experimental import pallas as pl
from jax.experimental.pallas import tpu as pltpu


def _round_up(x, m):
    return ((x + m - 1) // m) * m


# ----------------------------------------------------------------------------
# Fused all-layers kernel. One grid step = one (batch row, time tile).
# Per layer l (unrolled statically):
#   h   = ReLU(conv1_l(cur));  z = ReLU(conv2_l(h))
#   res = cur                     (identity)  or  1x1 conv (downsample)
#   cur = ReLU(z + res)
# Causal dilated convs are realised with per-layer VMEM staging buffers
# (carry | tile); zeroing the carry at t==0 IS the causal left zero-padding.
# ----------------------------------------------------------------------------
def _tcn_fused_kernel(x_ref, *rest, layers, TT):
    n_w = sum(6 if m["has_ds"] else 4 for m in layers)
    w_refs = rest[:n_w]
    o_ref = rest[n_w]
    bufs = rest[n_w + 1:]            # per layer: (x staging buf, h staging buf)

    t = pl.program_id(1)

    # Zero the causal-carry columns at the start of every batch row's time axis.
    @pl.when(t == 0)
    def _():
        bi = 0
        for m in layers:
            pad, al = m["pad"], m["al"]
            xbuf, hbuf = bufs[bi], bufs[bi + 1]
            bi += 2
            xbuf[:, al - pad:al] = jnp.zeros((m["cin"], pad), xbuf.dtype)
            hbuf[:, al - pad:al] = jnp.zeros((m["cout"], pad), hbuf.dtype)

    cur = x_ref[0].astype(jnp.float32)            # (C0, TT) f32
    wi = 0
    bi = 0
    for m in layers:
        K, d, pad, al = m["K"], m["d"], m["pad"], m["al"]
        w1, b1, w2, b2 = (w_refs[wi], w_refs[wi + 1],
                          w_refs[wi + 2], w_refs[wi + 3])
        wi += 4
        if m["has_ds"]:
            wds, bds = w_refs[wi], w_refs[wi + 1]
            wi += 2
        xbuf, hbuf = bufs[bi], bufs[bi + 1]
        bi += 2

        cur_bf = cur.astype(jnp.bfloat16)
        # Stage this tile at the 128-lane-aligned offset so earlier taps can
        # window into (carry | tile) without any concatenate copies.
        xbuf[:, al:al + TT] = cur

        # ---- conv1: K accumulating MXU matmuls (bf16 in, f32 accumulate) ----
        acc = jnp.dot(w1[K - 1], cur_bf, preferred_element_type=jnp.float32)
        for j in range(K - 1):
            off = al - pad + j * d
            win = xbuf[:, off:off + TT].astype(jnp.bfloat16)
            acc = acc + jnp.dot(w1[j], win, preferred_element_type=jnp.float32)
        h = jnp.maximum(acc + b1[...], 0.0)        # (C_out, TT) f32

        h_bf = h.astype(jnp.bfloat16)
        hbuf[:, al:al + TT] = h

        # ---- conv2 + ReLU ----
        acc2 = jnp.dot(w2[K - 1], h_bf, preferred_element_type=jnp.float32)
        for j in range(K - 1):
            off = al - pad + j * d
            win = hbuf[:, off:off + TT].astype(jnp.bfloat16)
            acc2 = acc2 + jnp.dot(w2[j], win, preferred_element_type=jnp.float32)
        z = jnp.maximum(acc2 + b2[...], 0.0)

        # ---- residual (identity or 1x1 conv) + final ReLU ----
        if m["has_ds"]:
            res = jnp.dot(wds[...], cur_bf,
                          preferred_element_type=jnp.float32) + bds[...]
        else:
            res = cur
        nxt = jnp.maximum(z + res, 0.0)

        # ---- carry only the last `pad` input/hidden columns to next T-tile ----
        xbuf[:, al - pad:al] = cur[:, TT - pad:]
        hbuf[:, al - pad:al] = h[:, TT - pad:]

        cur = nxt

    # Single lane-dense store of the final activation.
    o_ref[0] = cur.astype(o_ref.dtype)


# ----------------------------------------------------------------------------
# Wrapper
# ----------------------------------------------------------------------------
def _pick_vmem_limit():
    cap = 128 * 1024 * 1024
    try:
        cap = int(pltpu.get_tpu_info().vmem_capacity_bytes)
    except Exception:
        pass
    # Leave headroom for compiler-internal scratch:
    # 96 MiB on 128-MiB parts (v5e/v6e), 48 MiB on 64-MiB parts (v7x).
    return min(96 * 1024 * 1024, (cap * 3) // 4)


def _pick_time_tile(T, t_tile):
    if T <= t_tile:
        return T
    cand = max(128, (t_tile // 128) * 128)
    while cand >= 128:
        if T % cand == 0:
            return cand
        cand -= 128
    return T   # TODO(synk): masked ragged tail instead of one full-length tile


def prepare_tcn_params(params):
    """One-time weight prep (bf16 cast of MXU operands), hoisted out of the
    per-call path (the per-tap layout (K, C_out, C_in) is already MXU-ready)."""
    prepped = []
    for p in params:
        prepped.append({
            "w1": p["w1"].astype(jnp.bfloat16),
            "b1": p["b1"].astype(jnp.float32),
            "w2": p["w2"].astype(jnp.bfloat16),
            "b2": p["b2"].astype(jnp.float32),
            "w_ds": None if p["w_ds"] is None else p["w_ds"].astype(jnp.bfloat16),
            "b_ds": None if p["b_ds"] is None else p["b_ds"].astype(jnp.float32),
        })
    return prepped


def tcn_forward(x, prepped_params, *, t_tile=1024):
    """Fused TCN forward. x: (B, C_in, T) f32 -> (B, C_last, T) f32."""
    B, C0, T = x.shape
    TT = _pick_time_tile(T, t_tile)
    n_t = T // TT

    layers = []
    weight_args = []
    weight_specs = []
    scratch = []
    scratch_bytes = 0
    c_in = C0
    for i, p in enumerate(prepped_params):
        K, c_out, c_in_w = p["w1"].shape
        assert c_in_w == c_in, "layer input channel mismatch"
        assert K >= 2, "kernel_size must be >= 2 (TCN default is 2)"
        d = 2 ** i
        pad = (K - 1) * d
        assert pad <= TT, (
            f"causal context ({pad}) must fit in one time tile ({TT}); "
            f"raise t_tile")
        al = _round_up(pad, 128)       # 128-lane-aligned offset for the tile
        has_ds = p["w_ds"] is not None
        assert has_ds or c_in == c_out, "identity residual needs C_in == C_out"
        layers.append(dict(K=K, d=d, pad=pad, al=al, cin=c_in, cout=c_out,
                           has_ds=has_ds))

        weight_args += [p["w1"], p["b1"], p["w2"], p["b2"]]
        weight_specs += [
            pl.BlockSpec((K, c_out, c_in), lambda b, t: (0, 0, 0)),
            pl.BlockSpec((c_out, 1), lambda b, t: (0, 0)),
            pl.BlockSpec((K, c_out, c_out), lambda b, t: (0, 0, 0)),
            pl.BlockSpec((c_out, 1), lambda b, t: (0, 0)),
        ]
        if has_ds:
            weight_args += [p["w_ds"], p["b_ds"]]
            weight_specs += [
                pl.BlockSpec((c_out, c_in), lambda b, t: (0, 0)),
                pl.BlockSpec((c_out, 1), lambda b, t: (0, 0)),
            ]

        scratch += [pltpu.VMEM((c_in, al + TT), jnp.float32),    # x staging
                    pltpu.VMEM((c_out, al + TT), jnp.float32)]   # h staging
        scratch_bytes += 4 * (c_in + c_out) * (al + TT)
        c_in = c_out

    vmem_limit = _pick_vmem_limit()
    resident_bytes = scratch_bytes + sum(
        int(a.size) * a.dtype.itemsize for a in weight_args)
    assert resident_bytes < vmem_limit // 2, (
        "weights + staging buffers do not fit comfortably in VMEM; split the "
        "network into multiple fused pallas_calls")

    c_last = layers[-1]["cout"]
    kernel = functools.partial(_tcn_fused_kernel, layers=tuple(layers), TT=TT)

    return pl.pallas_call(
        kernel,
        out_shape=jax.ShapeDtypeStruct((B, c_last, T), x.dtype),
        grid_spec=pltpu.PrefetchScalarGridSpec(
            num_scalar_prefetch=0,
            grid=(B, n_t),             # T-tiles innermost: sequential causal carry
            in_specs=[pl.BlockSpec((1, C0, TT), lambda b, t: (b, 0, t))]
                     + weight_specs,
            out_specs=pl.BlockSpec((1, c_last, TT), lambda b, t: (b, 0, t)),
            scratch_shapes=scratch,
        ),
        compiler_params=pltpu.CompilerParams(
            dimension_semantics=("parallel", "arbitrary"),
            vmem_limit_bytes=vmem_limit,
        ),
    )(x, *weight_args)


# ----------------------------------------------------------------------------
# Deterministic parameter init (mirrors nn.Conv1d sizes; normal(0, 0.01))
# ----------------------------------------------------------------------------
def init_tcn_params(key, num_inputs, num_channels, kernel_size):
    params = []
    for i, out_c in enumerate(num_channels):
        in_c = num_inputs if i == 0 else num_channels[i - 1]
        key, k1, k2, k3, k4, k5, k6 = jax.random.split(key, 7)
        has_ds = in_c != out_c
        params.append({
            "w1": 0.01 * jax.random.normal(k1, (kernel_size, out_c, in_c),
                                           jnp.float32),
            "b1": 0.01 * jax.random.normal(k2, (out_c, 1), jnp.float32),
            "w2": 0.01 * jax.random.normal(k3, (kernel_size, out_c, out_c),
                                           jnp.float32),
            "b2": 0.01 * jax.random.normal(k4, (out_c, 1), jnp.float32),
            "w_ds": (0.01 * jax.random.normal(k5, (out_c, in_c), jnp.float32)
                     if has_ds else None),
            "b_ds": (0.01 * jax.random.normal(k6, (out_c, 1), jnp.float32)
                     if has_ds else None),
        })
    return params


# ----------------------------------------------------------------------------
# Pure-JAX f32 reference (for correctness check)
# ----------------------------------------------------------------------------
def _ref_conv(x, w, b, dilation):
    K, C_out, _ = w.shape
    T = x.shape[-1]
    pad = (K - 1) * dilation
    xp = jnp.pad(x, ((0, 0), (0, 0), (pad, 0)))
    y = jnp.zeros((x.shape[0], C_out, T), jnp.float32)
    for j in range(K):
        y = y + jnp.einsum("oc,bct->bot", w[j],
                           xp[:, :, j * dilation: j * dilation + T])
    return y + b[None]


def _ref_forward(x, params):
    for i, p in enumerate(params):
        d = 2 ** i
        h = jnp.maximum(_ref_conv(x, p["w1"], p["b1"], d), 0.0)
        h2 = jnp.maximum(_ref_conv(h, p["w2"], p["b2"], d), 0.0)
        if p["w_ds"] is None:
            res = x
        else:
            res = jnp.einsum("oc,bct->bot", p["w_ds"], x) + p["b_ds"][None]
        x = jnp.maximum(h2 + res, 0.0)
    return x


if __name__ == "__main__":
    # x: (Batch, input_channels, window_size) == PyTorch Conv1d NCW layout.
    # T=256 with t_tile=128 exercises the multi-T-tile causal-carry path
    # (2 tiles), 3 levels (dilations 1, 2, 4) and both residual variants
    # (layer 0: 8->16 downsample 1x1 conv; layers 1-2: identity).
    B, C_in, T = 2, 8, 256
    num_channels = [16, 16, 16]
    kernel_size = 2

    key = jax.random.PRNGKey(0)
    kx, kp = jax.random.split(key)
    x = jax.random.normal(kx, (B, C_in, T), jnp.float32)
    params = init_tcn_params(kp, C_in, num_channels, kernel_size)
    prepped = prepare_tcn_params(params)   # one-time weight prep (bf16 cast)

    fwd = jax.jit(functools.partial(tcn_forward, t_tile=128))
    out = jax.block_until_ready(fwd(x, prepped))
    ref = _ref_forward(x, params)

    assert out.shape == (B, num_channels[-1], T), out.shape
    err = float(jnp.max(jnp.abs(out - ref)))
    # bf16 MXU operands (f32 accumulation) -> relaxed tolerance vs f32 reference.
    assert jnp.allclose(out, ref, atol=5e-3, rtol=5e-3), \
        f"mismatch vs reference: max err {err}"
    print("KERNEL_OK")
</pallas_src>

<mosaic_0001>
module attributes {stable_mosaic.version = 11 : i64} {
  func.func @_tcn_fused_kernel(%arg0: i32, %arg1: i32, %arg2: memref<1x8x128xf32, #tpu.memory_space<vmem>>, %arg3: memref<2x16x8xbf16, #tpu.memory_space<vmem>>, %arg4: memref<16x1xf32, #tpu.memory_space<vmem>>, %arg5: memref<2x16x16xbf16, #tpu.memory_space<vmem>>, %arg6: memref<16x1xf32, #tpu.memory_space<vmem>>, %arg7: memref<16x8xbf16, #tpu.memory_space<vmem>>, %arg8: memref<16x1xf32, #tpu.memory_space<vmem>>, %arg9: memref<2x16x16xbf16, #tpu.memory_space<vmem>>, %arg10: memref<16x1xf32, #tpu.memory_space<vmem>>, %arg11: memref<2x16x16xbf16, #tpu.memory_space<vmem>>, %arg12: memref<16x1xf32, #tpu.memory_space<vmem>>, %arg13: memref<2x16x16xbf16, #tpu.memory_space<vmem>>, %arg14: memref<16x1xf32, #tpu.memory_space<vmem>>, %arg15: memref<2x16x16xbf16, #tpu.memory_space<vmem>>, %arg16: memref<16x1xf32, #tpu.memory_space<vmem>>, %arg17: memref<1x16x128xf32, #tpu.memory_space<vmem>>, %arg18: memref<8x256xf32, #tpu.memory_space<vmem>>, %arg19: memref<16x256xf32, #tpu.memory_space<vmem>>, %arg20: memref<16x256xf32, #tpu.memory_space<vmem>>, %arg21: memref<16x256xf32, #tpu.memory_space<vmem>>, %arg22: memref<16x256xf32, #tpu.memory_space<vmem>>, %arg23: memref<16x256xf32, #tpu.memory_space<vmem>>) attributes {dimension_semantics = [#tpu.dimension_semantics<parallel>, #tpu.dimension_semantics<arbitrary>], iteration_bounds = array<i64: 2, 2>, scalar_prefetch = 0 : i64, scratch_operands = 6 : i64, tpu.core_type = #tpu.core_type<tc>, window_params = [{transform_indices = @transform_0, window_bounds = array<i64: 1, 8, 128>}, {pipeline_mode = #tpu.pipeline_mode<synchronous>, transform_indices = @transform_1, window_bounds = array<i64: 2, 16, 8>}, {pipeline_mode = #tpu.pipeline_mode<synchronous>, transform_indices = @transform_2, window_bounds = array<i64: 16, 1>}, {pipeline_mode = #tpu.pipeline_mode<synchronous>, transform_indices = @transform_3, window_bounds = array<i64: 2, 16, 16>}, {pipeline_mode = #tpu.pipeline_mode<synchronous>, transform_indices = @transform_4, window_bounds = array<i64: 16, 1>}, {pipeline_mode = #tpu.pipeline_mode<synchronous>, transform_indices = @transform_5, window_bounds = array<i64: 16, 8>}, {pipeline_mode = #tpu.pipeline_mode<synchronous>, transform_indices = @transform_6, window_bounds = array<i64: 16, 1>}, {pipeline_mode = #tpu.pipeline_mode<synchronous>, transform_indices = @transform_7, window_bounds = array<i64: 2, 16, 16>}, {pipeline_mode = #tpu.pipeline_mode<synchronous>, transform_indices = @transform_8, window_bounds = array<i64: 16, 1>}, {pipeline_mode = #tpu.pipeline_mode<synchronous>, transform_indices = @transform_9, window_bounds = array<i64: 2, 16, 16>}, {pipeline_mode = #tpu.pipeline_mode<synchronous>, transform_indices = @transform_10, window_bounds = array<i64: 16, 1>}, {pipeline_mode = #tpu.pipeline_mode<synchronous>, transform_indices = @transform_11, window_bounds = array<i64: 2, 16, 16>}, {pipeline_mode = #tpu.pipeline_mode<synchronous>, transform_indices = @transform_12, window_bounds = array<i64: 16, 1>}, {pipeline_mode = #tpu.pipeline_mode<synchronous>, transform_indices = @transform_13, window_bounds = array<i64: 2, 16, 16>}, {pipeline_mode = #tpu.pipeline_mode<synchronous>, transform_indices = @transform_14, window_bounds = array<i64: 16, 1>}, {transform_indices = @transform_15, window_bounds = array<i64: 1, 16, 128>}]} {
    %c0_i32 = arith.constant 0 : i32
    %0 = arith.cmpi eq, %arg1, %c0_i32 : i32
    %1 = arith.extui %0 : i1 to i32
    %c0_i32_0 = arith.constant 0 : i32
    %2 = arith.cmpi ne, %1, %c0_i32_0 : i32
    scf.if %2 {
      %cst_110 = arith.constant 0.000000e+00 : f32
      %130 = vector.broadcast %cst_110 : f32 to vector<8x1xf32>
      %c0_111 = arith.constant 0 : index
      %c127_112 = arith.constant 127 : index
      %131 = vector.load %arg18[%c0_111, %c127_112] : memref<8x256xf32, #tpu.memory_space<vmem>>, vector<8x1xf32>
      tpu.vector_store %arg18[%c0_111, %c127_112], %130 {strides = array<i32>} : memref<8x256xf32, #tpu.memory_space<vmem>>, vector<8x1xf32>,
      %cst_113 = arith.constant 0.000000e+00 : f32
      %132 = vector.broadcast %cst_113 : f32 to vector<16x1xf32>
      %c0_114 = arith.constant 0 : index
      %c127_115 = arith.constant 127 : index
      %133 = vector.load %arg19[%c0_114, %c127_115] : memref<16x256xf32, #tpu.memory_space<vmem>>, vector<16x1xf32>
      tpu.vector_store %arg19[%c0_114, %c127_115], %132 {strides = array<i32>} : memref<16x256xf32, #tpu.memory_space<vmem>>, vector<16x1xf32>,
      %cst_116 = arith.constant 0.000000e+00 : f32
      %134 = vector.broadcast %cst_116 : f32 to vector<16x2xf32>
      %c0_117 = arith.constant 0 : index
      %c126_118 = arith.constant 126 : index
      %135 = vector.load %arg20[%c0_117, %c126_118] : memref<16x256xf32, #tpu.memory_space<vmem>>, vector<16x2xf32>
      tpu.vector_store %arg20[%c0_117, %c126_118], %134 {strides = array<i32>} : memref<16x256xf32, #tpu.memory_space<vmem>>, vector<16x2xf32>,
      %cst_119 = arith.constant 0.000000e+00 : f32
      %136 = vector.broadcast %cst_119 : f32 to vector<16x2xf32>
      %c0_120 = arith.constant 0 : index
      %c126_121 = arith.constant 126 : index
      %137 = vector.load %arg21[%c0_120, %c126_121] : memref<16x256xf32, #tpu.memory_space<vmem>>, vector<16x2xf32>
      tpu.vector_store %arg21[%c0_120, %c126_121], %136 {strides = array<i32>} : memref<16x256xf32, #tpu.memory_space<vmem>>, vector<16x2xf32>,
      %cst_122 = arith.constant 0.000000e+00 : f32
      %138 = vector.broadcast %cst_122 : f32 to vector<16x4xf32>
      %c0_123 = arith.constant 0 : index
      %c124_124 = arith.constant 124 : index
      %139 = vector.load %arg22[%c0_123, %c124_124] : memref<16x256xf32, #tpu.memory_space<vmem>>, vector<16x4xf32>
      tpu.vector_store %arg22[%c0_123, %c124_124], %138 {strides = array<i32>} : memref<16x256xf32, #tpu.memory_space<vmem>>, vector<16x4xf32>,
      %cst_125 = arith.constant 0.000000e+00 : f32
      %140 = vector.broadcast %cst_125 : f32 to vector<16x4xf32>
      %c0_126 = arith.constant 0 : index
      %c124_127 = arith.constant 124 : index
      %141 = vector.load %arg23[%c0_126, %c124_127] : memref<16x256xf32, #tpu.memory_space<vmem>>, vector<16x4xf32>
      tpu.vector_store %arg23[%c0_126, %c124_127], %140 {strides = array<i32>} : memref<16x256xf32, #tpu.memory_space<vmem>>, vector<16x4xf32>,
    } else {
    }
    %c0 = arith.constant 0 : index
    %c0_1 = arith.constant 0 : index
    %c0_2 = arith.constant 0 : index
    %3 = vector.load %arg2[%c0, %c0_1, %c0_2] : memref<1x8x128xf32, #tpu.memory_space<vmem>>, vector<1x8x128xf32>
    %4 = vector.shape_cast %3 : vector<1x8x128xf32> to vector<8x128xf32>
    %5 = arith.truncf %4 : vector<8x128xf32> to vector<8x128xbf16>
    %c0_3 = arith.constant 0 : index
    %c128 = arith.constant 128 : index
    %6 = vector.load %arg18[%c0_3, %c128] : memref<8x256xf32, #tpu.memory_space<vmem>>, vector<8x128xf32>
    tpu.vector_store %arg18[%c0_3, %c128], %4 {strides = array<i32>} : memref<8x256xf32, #tpu.memory_space<vmem>>, vector<8x128xf32>,
    %c1 = arith.constant 1 : index
    %c0_4 = arith.constant 0 : index
    %c0_5 = arith.constant 0 : index
    %7 = vector.load %arg3[%c1, %c0_4, %c0_5] : memref<2x16x8xbf16, #tpu.memory_space<vmem>>, vector<1x16x8xbf16>
    %8 = vector.shape_cast %7 : vector<1x16x8xbf16> to vector<16x8xbf16>
    %cst = arith.constant dense<0.000000e+00> : vector<16x128xf32>
    %9 = tpu.matmul %8, %5, %cst {dimension_numbers = #tpu.dot_dimension_numbers<[1], [0], [0], [1], [0, 0, 1, 1], [], []>} : vector<16x8xbf16>, vector<8x128xbf16>, vector<16x128xf32> -> vector<16x128xf32>
    %c0_6 = arith.constant 0 : index
    %c127 = arith.constant 127 : index
    %10 = vector.load %arg18[%c0_6, %c127] : memref<8x256xf32, #tpu.memory_space<vmem>>, vector<8x128xf32>
    %11 = arith.truncf %10 : vector<8x128xf32> to vector<8x128xbf16>
    %c0_7 = arith.constant 0 : index
    %c0_8 = arith.constant 0 : index
    %c0_9 = arith.constant 0 : index
    %12 = vector.load %arg3[%c0_7, %c0_8, %c0_9] : memref<2x16x8xbf16, #tpu.memory_space<vmem>>, vector<1x16x8xbf16>
    %13 = vector.shape_cast %12 : vector<1x16x8xbf16> to vector<16x8xbf16>
    %cst_10 = arith.constant dense<0.000000e+00> : vector<16x128xf32>
    %14 = tpu.matmul %13, %11, %cst_10 {dimension_numbers = #tpu.dot_dimension_numbers<[1], [0], [0], [1], [0, 0, 1, 1], [], []>} : vector<16x8xbf16>, vector<8x128xbf16>, vector<16x128xf32> -> vector<16x128xf32>
    %15 = arith.addf %9, %14 : vector<16x128xf32>
    %c0_11 = arith.constant 0 : index
    %c0_12 = arith.constant 0 : index
    %16 = vector.load %arg4[%c0_11, %c0_12] : memref<16x1xf32, #tpu.memory_space<vmem>>, vector<16x1xf32>
    %17 = vector.broadcast %16 : vector<16x1xf32> to vector<16x128xf32>
    %18 = arith.addf %15, %17 : vector<16x128xf32>
    %cst_13 = arith.constant 0.000000e+00 : f32
    %19 = vector.broadcast %cst_13 : f32 to vector<16x128xf32>
    %20 = arith.maximumf %18, %19 : vector<16x128xf32>
    %21 = arith.truncf %20 : vector<16x128xf32> to vector<16x128xbf16>
    %c0_14 = arith.constant 0 : index
    %c128_15 = arith.constant 128 : index
    %22 = vector.load %arg19[%c0_14, %c128_15] : memref<16x256xf32, #tpu.memory_space<vmem>>, vector<16x128xf32>
    tpu.vector_store %arg19[%c0_14, %c128_15], %20 {strides = array<i32>} : memref<16x256xf32, #tpu.memory_space<vmem>>, vector<16x128xf32>,
    %c1_16 = arith.constant 1 : index
    %c0_17 = arith.constant 0 : index
    %c0_18 = arith.constant 0 : index
    %23 = vector.load %arg5[%c1_16, %c0_17, %c0_18] : memref<2x16x16xbf16, #tpu.memory_space<vmem>>, vector<1x16x16xbf16>
    %24 = vector.shape_cast %23 : vector<1x16x16xbf16> to vector<16x16xbf16>
    %cst_19 = arith.constant dense<0.000000e+00> : vector<16x128xf32>
    %25 = tpu.matmul %24, %21, %cst_19 {dimension_numbers = #tpu.dot_dimension_numbers<[1], [0], [0], [1], [0, 0, 1, 1], [], []>} : vector<16x16xbf16>, vector<16x128xbf16>, vector<16x128xf32> -> vector<16x128xf32>
    %c0_20 = arith.constant 0 : index
    %c127_21 = arith.constant 127 : index
    %26 = vector.load %arg19[%c0_20, %c127_21] : memref<16x256xf32, #tpu.memory_space<vmem>>, vector<16x128xf32>
    %27 = arith.truncf %26 : vector<16x128xf32> to vector<16x128xbf16>
    %c0_22 = arith.constant 0 : index
    %c0_23 = arith.constant 0 : index
    %c0_24 = arith.constant 0 : index
    %28 = vector.load %arg5[%c0_22, %c0_23, %c0_24] : memref<2x16x16xbf16, #tpu.memory_space<vmem>>, vector<1x16x16xbf16>
    %29 = vector.shape_cast %28 : vector<1x16x16xbf16> to vector<16x16xbf16>
    %cst_25 = arith.constant dense<0.000000e+00> : vector<16x128xf32>
    %30 = tpu.matmul %29, %27, %cst_25 {dimension_numbers = #tpu.dot_dimension_numbers<[1], [0], [0], [1], [0, 0, 1, 1], [], []>} : vector<16x16xbf16>, vector<16x128xbf16>, vector<16x128xf32> -> vector<16x128xf32>
    %31 = arith.addf %25, %30 : vector<16x128xf32>
    %c0_26 = arith.constant 0 : index
    %c0_27 = arith.constant 0 : index
    %32 = vector.load %arg6[%c0_26, %c0_27] : memref<16x1xf32, #tpu.memory_space<vmem>>, vector<16x1xf32>
    %33 = vector.broadcast %32 : vector<16x1xf32> to vector<16x128xf32>
    %34 = arith.addf %31, %33 : vector<16x128xf32>
    %cst_28 = arith.constant 0.000000e+00 : f32
    %35 = vector.broadcast %cst_28 : f32 to vector<16x128xf32>
    %36 = arith.maximumf %34, %35 : vector<16x128xf32>
    %c0_29 = arith.constant 0 : index
    %c0_30 = arith.constant 0 : index
    %37 = vector.load %arg7[%c0_29, %c0_30] : memref<16x8xbf16, #tpu.memory_space<vmem>>, vector<16x8xbf16>
    %cst_31 = arith.constant dense<0.000000e+00> : vector<16x128xf32>
    %38 = tpu.matmul %37, %5, %cst_31 {dimension_numbers = #tpu.dot_dimension_numbers<[1], [0], [0], [1], [0, 0, 1, 1], [], []>} : vector<16x8xbf16>, vector<8x128xbf16>, vector<16x128xf32> -> vector<16x128xf32>
    %c0_32 = arith.constant 0 : index
    %c0_33 = arith.constant 0 : index
    %39 = vector.load %arg8[%c0_32, %c0_33] : memref<16x1xf32, #tpu.memory_space<vmem>>, vector<16x1xf32>
    %40 = vector.broadcast %39 : vector<16x1xf32> to vector<16x128xf32>
    %41 = arith.addf %38, %40 : vector<16x128xf32>
    %42 = arith.addf %36, %41 : vector<16x128xf32>
    %cst_34 = arith.constant 0.000000e+00 : f32
    %43 = vector.broadcast %cst_34 : f32 to vector<16x128xf32>
    %44 = arith.maximumf %42, %43 : vector<16x128xf32>
    %45 = vector.extract_strided_slice %4 {offsets = [0, 127], sizes = [8, 1], strides = [1, 1]} : vector<8x128xf32> to vector<8x1xf32>
    %c0_35 = arith.constant 0 : index
    %c127_36 = arith.constant 127 : index
    %46 = vector.load %arg18[%c0_35, %c127_36] : memref<8x256xf32, #tpu.memory_space<vmem>>, vector<8x1xf32>
    tpu.vector_store %arg18[%c0_35, %c127_36], %45 {strides = array<i32>} : memref<8x256xf32, #tpu.memory_space<vmem>>, vector<8x1xf32>,
    %47 = vector.extract_strided_slice %20 {offsets = [0, 127], sizes = [16, 1], strides = [1, 1]} : vector<16x128xf32> to vector<16x1xf32>
    %c0_37 = arith.constant 0 : index
    %c127_38 = arith.constant 127 : index
    %48 = vector.load %arg19[%c0_37, %c127_38] : memref<16x256xf32, #tpu.memory_space<vmem>>, vector<16x1xf32>
    tpu.vector_store %arg19[%c0_37, %c127_38], %47 {strides = array<i32>} : memref<16x256xf32, #tpu.memory_space<vmem>>, vector<16x1xf32>,
    %49 = arith.truncf %44 : vector<16x128xf32> to vector<16x128xbf16>
    %c0_39 = arith.constant 0 : index
    %c128_40 = arith.constant 128 : index
    %50 = vector.load %arg20[%c0_39, %c128_40] : memref<16x256xf32, #tpu.memory_space<vmem>>, vector<16x128xf32>
    tpu.vector_store %arg20[%c0_39, %c128_40], %44 {strides = array<i32>} : memref<16x256xf32, #tpu.memory_space<vmem>>, vector<16x128xf32>,
    %c1_41 = arith.constant 1 : index
    %c0_42 = arith.constant 0 : index
    %c0_43 = arith.constant 0 : index
    %51 = vector.load %arg9[%c1_41, %c0_42, %c0_43] : memref<2x16x16xbf16, #tpu.memory_space<vmem>>, vector<1x16x16xbf16>
    %52 = vector.shape_cast %51 : vector<1x16x16xbf16> to vector<16x16xbf16>
    %cst_44 = arith.constant dense<0.000000e+00> : vector<16x128xf32>
    %53 = tpu.matmul %52, %49, %cst_44 {dimension_numbers = #tpu.dot_dimension_numbers<[1], [0], [0], [1], [0, 0, 1, 1], [], []>} : vector<16x16xbf16>, vector<16x128xbf16>, vector<16x128xf32> -> vector<16x128xf32>
    %c0_45 = arith.constant 0 : index
    %c126 = arith.constant 126 : index
    %54 = vector.load %arg20[%c0_45, %c126] : memref<16x256xf32, #tpu.memory_space<vmem>>, vector<16x128xf32>
    %55 = arith.truncf %54 : vector<16x128xf32> to vector<16x128xbf16>
    %c0_46 = arith.constant 0 : index
    %c0_47 = arith.constant 0 : index
    %c0_48 = arith.constant 0 : index
    %56 = vector.load %arg9[%c0_46, %c0_47, %c0_48] : memref<2x16x16xbf16, #tpu.memory_space<vmem>>, vector<1x16x16xbf16>
    %57 = vector.shape_cast %56 : vector<1x16x16xbf16> to vector<16x16xbf16>
    %cst_49 = arith.constant dense<0.000000e+00> : vector<16x128xf32>
    %58 = tpu.matmul %57, %55, %cst_49 {dimension_numbers = #tpu.dot_dimension_numbers<[1], [0], [0], [1], [0, 0, 1, 1], [], []>} : vector<16x16xbf16>, vector<16x128xbf16>, vector<16x128xf32> -> vector<16x128xf32>
    %59 = arith.addf %53, %58 : vector<16x128xf32>
    %c0_50 = arith.constant 0 : index
    %c0_51 = arith.constant 0 : index
    %60 = vector.load %arg10[%c0_50, %c0_51] : memref<16x1xf32, #tpu.memory_space<vmem>>, vector<16x1xf32>
    %61 = vector.broadcast %60 : vector<16x1xf32> to vector<16x128xf32>
    %62 = arith.addf %59, %61 : vector<16x128xf32>
    %cst_52 = arith.constant 0.000000e+00 : f32
    %63 = vector.broadcast %cst_52 : f32 to vector<16x128xf32>
    %64 = arith.maximumf %62, %63 : vector<16x128xf32>
    %65 = arith.truncf %64 : vector<16x128xf32> to vector<16x128xbf16>
    %c0_53 = arith.constant 0 : index
    %c128_54 = arith.constant 128 : index
    %66 = vector.load %arg21[%c0_53, %c128_54] : memref<16x256xf32, #tpu.memory_space<vmem>>, vector<16x128xf32>
    tpu.vector_store %arg21[%c0_53, %c128_54], %64 {strides = array<i32>} : memref<16x256xf32, #tpu.memory_space<vmem>>, vector<16x128xf32>,
    %c1_55 = arith.constant 1 : index
    %c0_56 = arith.constant 0 : index
    %c0_57 = arith.constant 0 : index
    %67 = vector.load %arg11[%c1_55, %c0_56, %c0_57] : memref<2x16x16xbf16, #tpu.memory_space<vmem>>, vector<1x16x16xbf16>
    %68 = vector.shape_cast %67 : vector<1x16x16xbf16> to vector<16x16xbf16>
    %cst_58 = arith.constant dense<0.000000e+00> : vector<16x128xf32>
    %69 = tpu.matmul %68, %65, %cst_58 {dimension_numbers = #tpu.dot_dimension_numbers<[1], [0], [0], [1], [0, 0, 1, 1], [], []>} : vector<16x16xbf16>, vector<16x128xbf16>, vector<16x128xf32> -> vector<16x128xf32>
    %c0_59 = arith.constant 0 : index
    %c126_60 = arith.constant 126 : index
    %70 = vector.load %arg21[%c0_59, %c126_60] : memref<16x256xf32, #tpu.memory_space<vmem>>, vector<16x128xf32>
    %71 = arith.truncf %70 : vector<16x128xf32> to vector<16x128xbf16>
    %c0_61 = arith.constant 0 : index
    %c0_62 = arith.constant 0 : index
    %c0_63 = arith.constant 0 : index
    %72 = vector.load %arg11[%c0_61, %c0_62, %c0_63] : memref<2x16x16xbf16, #tpu.memory_space<vmem>>, vector<1x16x16xbf16>
    %73 = vector.shape_cast %72 : vector<1x16x16xbf16> to vector<16x16xbf16>
    %cst_64 = arith.constant dense<0.000000e+00> : vector<16x128xf32>
    %74 = tpu.matmul %73, %71, %cst_64 {dimension_numbers = #tpu.dot_dimension_numbers<[1], [0], [0], [1], [0, 0, 1, 1], [], []>} : vector<16x16xbf16>, vector<16x128xbf16>, vector<16x128xf32> -> vector<16x128xf32>
    %75 = arith.addf %69, %74 : vector<16x128xf32>
    %c0_65 = arith.constant 0 : index
    %c0_66 = arith.constant 0 : index
    %76 = vector.load %arg12[%c0_65, %c0_66] : memref<16x1xf32, #tpu.memory_space<vmem>>, vector<16x1xf32>
    %77 = vector.broadcast %76 : vector<16x1xf32> to vector<16x128xf32>
    %78 = arith.addf %75, %77 : vector<16x128xf32>
    %cst_67 = arith.constant 0.000000e+00 : f32
    %79 = vector.broadcast %cst_67 : f32 to vector<16x128xf32>
    %80 = arith.maximumf %78, %79 : vector<16x128xf32>
    %81 = arith.addf %80, %44 : vector<16x128xf32>
    %cst_68 = arith.constant 0.000000e+00 : f32
    %82 = vector.broadcast %cst_68 : f32 to vector<16x128xf32>
    %83 = arith.maximumf %81, %82 : vector<16x128xf32>
    %84 = vector.extract_strided_slice %44 {offsets = [0, 126], sizes = [16, 2], strides = [1, 1]} : vector<16x128xf32> to vector<16x2xf32>
    %c0_69 = arith.constant 0 : index
    %c126_70 = arith.constant 126 : index
    %85 = vector.load %arg20[%c0_69, %c126_70] : memref<16x256xf32, #tpu.memory_space<vmem>>, vector<16x2xf32>
    tpu.vector_store %arg20[%c0_69, %c126_70], %84 {strides = array<i32>} : memref<16x256xf32, #tpu.memory_space<vmem>>, vector<16x2xf32>,
    %86 = vector.extract_strided_slice %64 {offsets = [0, 126], sizes = [16, 2], strides = [1, 1]} : vector<16x128xf32> to vector<16x2xf32>
    %c0_71 = arith.constant 0 : index
    %c126_72 = arith.constant 126 : index
    %87 = vector.load %arg21[%c0_71, %c126_72] : memref<16x256xf32, #tpu.memory_space<vmem>>, vector<16x2xf32>
    tpu.vector_store %arg21[%c0_71, %c126_72], %86 {strides = array<i32>} : memref<16x256xf32, #tpu.memory_space<vmem>>, vector<16x2xf32>,
    %88 = arith.truncf %83 : vector<16x128xf32> to vector<16x128xbf16>
    %c0_73 = arith.constant 0 : index
    %c128_74 = arith.constant 128 : index
    %89 = vector.load %arg22[%c0_73, %c128_74] : memref<16x256xf32, #tpu.memory_space<vmem>>, vector<16x128xf32>
    tpu.vector_store %arg22[%c0_73, %c128_74], %83 {strides = array<i32>} : memref<16x256xf32, #tpu.memory_space<vmem>>, vector<16x128xf32>,
    %c1_75 = arith.constant 1 : index
    %c0_76 = arith.constant 0 : index
    %c0_77 = arith.constant 0 : index
    %90 = vector.load %arg13[%c1_75, %c0_76, %c0_77] : memref<2x16x16xbf16, #tpu.memory_space<vmem>>, vector<1x16x16xbf16>
    %91 = vector.shape_cast %90 : vector<1x16x16xbf16> to vector<16x16xbf16>
    %cst_78 = arith.constant dense<0.000000e+00> : vector<16x128xf32>
    %92 = tpu.matmul %91, %88, %cst_78 {dimension_numbers = #tpu.dot_dimension_numbers<[1], [0], [0], [1], [0, 0, 1, 1], [], []>} : vector<16x16xbf16>, vector<16x128xbf16>, vector<16x128xf32> -> vector<16x128xf32>
    %c0_79 = arith.constant 0 : index
    %c124 = arith.constant 124 : index
    %93 = vector.load %arg22[%c0_79, %c124] : memref<16x256xf32, #tpu.memory_space<vmem>>, vector<16x128xf32>
    %94 = arith.truncf %93 : vector<16x128xf32> to vector<16x128xbf16>
    %c0_80 = arith.constant 0 : index
    %c0_81 = arith.constant 0 : index
    %c0_82 = arith.constant 0 : index
    %95 = vector.load %arg13[%c0_80, %c0_81, %c0_82] : memref<2x16x16xbf16, #tpu.memory_space<vmem>>, vector<1x16x16xbf16>
    %96 = vector.shape_cast %95 : vector<1x16x16xbf16> to vector<16x16xbf16>
    %cst_83 = arith.constant dense<0.000000e+00> : vector<16x128xf32>
    %97 = tpu.matmul %96, %94, %cst_83 {dimension_numbers = #tpu.dot_dimension_numbers<[1], [0], [0], [1], [0, 0, 1, 1], [], []>} : vector<16x16xbf16>, vector<16x128xbf16>, vector<16x128xf32> -> vector<16x128xf32>
    %98 = arith.addf %92, %97 : vector<16x128xf32>
    %c0_84 = arith.constant 0 : index
    %c0_85 = arith.constant 0 : index
    %99 = vector.load %arg14[%c0_84, %c0_85] : memref<16x1xf32, #tpu.memory_space<vmem>>, vector<16x1xf32>
    %100 = vector.broadcast %99 : vector<16x1xf32> to vector<16x128xf32>
    %101 = arith.addf %98, %100 : vector<16x128xf32>
    %cst_86 = arith.constant 0.000000e+00 : f32
    %102 = vector.broadcast %cst_86 : f32 to vector<16x128xf32>
    %103 = arith.maximumf %101, %102 : vector<16x128xf32>
    %104 = arith.truncf %103 : vector<16x128xf32> to vector<16x128xbf16>
    %c0_87 = arith.constant 0 : index
    %c128_88 = arith.constant 128 : index
    %105 = vector.load %arg23[%c0_87, %c128_88] : memref<16x256xf32, #tpu.memory_space<vmem>>, vector<16x128xf32>
    tpu.vector_store %arg23[%c0_87, %c128_88], %103 {strides = array<i32>} : memref<16x256xf32, #tpu.memory_space<vmem>>, vector<16x128xf32>,
    %c1_89 = arith.constant 1 : index
    %c0_90 = arith.constant 0 : index
    %c0_91 = arith.constant 0 : index
    %106 = vector.load %arg15[%c1_89, %c0_90, %c0_91] : memref<2x16x16xbf16, #tpu.memory_space<vmem>>, vector<1x16x16xbf16>
    %107 = vector.shape_cast %106 : vector<1x16x16xbf16> to vector<16x16xbf16>
    %cst_92 = arith.constant dense<0.000000e+00> : vector<16x128xf32>
    %108 = tpu.matmul %107, %104, %cst_92 {dimension_numbers = #tpu.dot_dimension_numbers<[1], [0], [0], [1], [0, 0, 1, 1], [], []>} : vector<16x16xbf16>, vector<16x128xbf16>, vector<16x128xf32> -> vector<16x128xf32>
    %c0_93 = arith.constant 0 : index
    %c124_94 = arith.constant 124 : index
    %109 = vector.load %arg23[%c0_93, %c124_94] : memref<16x256xf32, #tpu.memory_space<vmem>>, vector<16x128xf32>
    %110 = arith.truncf %109 : vector<16x128xf32> to vector<16x128xbf16>
    %c0_95 = arith.constant 0 : index
    %c0_96 = arith.constant 0 : index
    %c0_97 = arith.constant 0 : index
    %111 = vector.load %arg15[%c0_95, %c0_96, %c0_97] : memref<2x16x16xbf16, #tpu.memory_space<vmem>>, vector<1x16x16xbf16>
    %112 = vector.shape_cast %111 : vector<1x16x16xbf16> to vector<16x16xbf16>
    %cst_98 = arith.constant dense<0.000000e+00> : vector<16x128xf32>
    %113 = tpu.matmul %112, %110, %cst_98 {dimension_numbers = #tpu.dot_dimension_numbers<[1], [0], [0], [1], [0, 0, 1, 1], [], []>} : vector<16x16xbf16>, vector<16x128xbf16>, vector<16x128xf32> -> vector<16x128xf32>
    %114 = arith.addf %108, %113 : vector<16x128xf32>
    %c0_99 = arith.constant 0 : index
    %c0_100 = arith.constant 0 : index
    %115 = vector.load %arg16[%c0_99, %c0_100] : memref<16x1xf32, #tpu.memory_space<vmem>>, vector<16x1xf32>
    %116 = vector.broadcast %115 : vector<16x1xf32> to vector<16x128xf32>
    %117 = arith.addf %114, %116 : vector<16x128xf32>
    %cst_101 = arith.constant 0.000000e+00 : f32
    %118 = vector.broadcast %cst_101 : f32 to vector<16x128xf32>
    %119 = arith.maximumf %117, %118 : vector<16x128xf32>
    %120 = arith.addf %119, %83 : vector<16x128xf32>
    %cst_102 = arith.constant 0.000000e+00 : f32
    %121 = vector.broadcast %cst_102 : f32 to vector<16x128xf32>
    %122 = arith.maximumf %120, %121 : vector<16x128xf32>
    %123 = vector.extract_strided_slice %83 {offsets = [0, 124], sizes = [16, 4], strides = [1, 1]} : vector<16x128xf32> to vector<16x4xf32>
    %c0_103 = arith.constant 0 : index
    %c124_104 = arith.constant 124 : index
    %124 = vector.load %arg22[%c0_103, %c124_104] : memref<16x256xf32, #tpu.memory_space<vmem>>, vector<16x4xf32>
    tpu.vector_store %arg22[%c0_103, %c124_104], %123 {strides = array<i32>} : memref<16x256xf32, #tpu.memory_space<vmem>>, vector<16x4xf32>,
    %125 = vector.extract_strided_slice %103 {offsets = [0, 124], sizes = [16, 4], strides = [1, 1]} : vector<16x128xf32> to vector<16x4xf32>
    %c0_105 = arith.constant 0 : index
    %c124_106 = arith.constant 124 : index
    %126 = vector.load %arg23[%c0_105, %c124_106] : memref<16x256xf32, #tpu.memory_space<vmem>>, vector<16x4xf32>
    tpu.vector_store %arg23[%c0_105, %c124_106], %125 {strides = array<i32>} : memref<16x256xf32, #tpu.memory_space<vmem>>, vector<16x4xf32>,
    %c0_107 = arith.constant 0 : index
    %c0_108 = arith.constant 0 : index
    %c0_109 = arith.constant 0 : index
    %127 = vector.load %arg17[%c0_107, %c0_108, %c0_109] : memref<1x16x128xf32, #tpu.memory_space<vmem>>, vector<1x16x128xf32>
    %128 = vector.shape_cast %127 : vector<1x16x128xf32> to vector<16x128xf32>
    %129 = vector.shape_cast %122 : vector<16x128xf32> to vector<1x16x128xf32>
    tpu.vector_store %arg17[%c0_107, %c0_108, %c0_109], %129 {strides = array<i32>} : memref<1x16x128xf32, #tpu.memory_space<vmem>>, vector<1x16x128xf32>,
    return
  }
  func.func @transform_0(%arg0: i32, %arg1: i32) -> (i32, i32, i32) {
    %c0_i32 = arith.constant 0 : i32
    %c0_i32_0 = arith.constant 0 : i32
    return %arg0, %c0_i32, %arg1 : i32, i32, i32
  }
  func.func @transform_1(%arg0: i32, %arg1: i32) -> (i32, i32, i32) {
    %c0_i32 = arith.constant 0 : i32
    %c0_i32_0 = arith.constant 0 : i32
    %c0_i32_1 = arith.constant 0 : i32
    %c0_i32_2 = arith.constant 0 : i32
    return %c0_i32, %c0_i32_0, %c0_i32_1 : i32, i32, i32
  }
  func.func @transform_2(%arg0: i32, %arg1: i32) -> (i32, i32) {
    %c0_i32 = arith.constant 0 : i32
    %c0_i32_0 = arith.constant 0 : i32
    %c0_i32_1 = arith.constant 0 : i32
    return %c0_i32, %c0_i32_0 : i32, i32
  }
  func.func @transform_3(%arg0: i32, %arg1: i32) -> (i32, i32, i32) {
    %c0_i32 = arith.constant 0 : i32
    %c0_i32_0 = arith.constant 0 : i32
    %c0_i32_1 = arith.constant 0 : i32
    %c0_i32_2 = arith.constant 0 : i32
    return %c0_i32, %c0_i32_0, %c0_i32_1 : i32, i32, i32
  }
  func.func @transform_4(%arg0: i32, %arg1: i32) -> (i32, i32) {
    %c0_i32 = arith.constant 0 : i32
    %c0_i32_0 = arith.constant 0 : i32
    %c0_i32_1 = arith.constant 0 : i32
    return %c0_i32, %c0_i32_0 : i32, i32
  }
  func.func @transform_5(%arg0: i32, %arg1: i32) -> (i32, i32) {
    %c0_i32 = arith.constant 0 : i32
    %c0_i32_0 = arith.constant 0 : i32
    %c0_i32_1 = arith.constant 0 : i32
    return %c0_i32, %c0_i32_0 : i32, i32
  }
  func.func @transform_6(%arg0: i32, %arg1: i32) -> (i32, i32) {
    %c0_i32 = arith.constant 0 : i32
    %c0_i32_0 = arith.constant 0 : i32
    %c0_i32_1 = arith.constant 0 : i32
    return %c0_i32, %c0_i32_0 : i32, i32
  }
  func.func @transform_7(%arg0: i32, %arg1: i32) -> (i32, i32, i32) {
    %c0_i32 = arith.constant 0 : i32
    %c0_i32_0 = arith.constant 0 : i32
    %c0_i32_1 = arith.constant 0 : i32
    %c0_i32_2 = arith.constant 0 : i32
    return %c0_i32, %c0_i32_0, %c0_i32_1 : i32, i32, i32
  }
  func.func @transform_8(%arg0: i32, %arg1: i32) -> (i32, i32) {
    %c0_i32 = arith.constant 0 : i32
    %c0_i32_0 = arith.constant 0 : i32
    %c0_i32_1 = arith.constant 0 : i32
    return %c0_i32, %c0_i32_0 : i32, i32
  }
  func.func @transform_9(%arg0: i32, %arg1: i32) -> (i32, i32, i32) {
    %c0_i32 = arith.constant 0 : i32
    %c0_i32_0 = arith.constant 0 : i32
    %c0_i32_1 = arith.constant 0 : i32
    %c0_i32_2 = arith.constant 0 : i32
    return %c0_i32, %c0_i32_0, %c0_i32_1 : i32, i32, i32
  }
  func.func @transform_10(%arg0: i32, %arg1: i32) -> (i32, i32) {
    %c0_i32 = arith.constant 0 : i32
    %c0_i32_0 = arith.constant 0 : i32
    %c0_i32_1 = arith.constant 0 : i32
    return %c0_i32, %c0_i32_0 : i32, i32
  }
  func.func @transform_11(%arg0: i32, %arg1: i32) -> (i32, i32, i32) {
    %c0_i32 = arith.constant 0 : i32
    %c0_i32_0 = arith.constant 0 : i32
    %c0_i32_1 = arith.constant 0 : i32
    %c0_i32_2 = arith.constant 0 : i32
    return %c0_i32, %c0_i32_0, %c0_i32_1 : i32, i32, i32
  }
  func.func @transform_12(%arg0: i32, %arg1: i32) -> (i32, i32) {
    %c0_i32 = arith.constant 0 : i32
    %c0_i32_0 = arith.constant 0 : i32
    %c0_i32_1 = arith.constant 0 : i32
    return %c0_i32, %c0_i32_0 : i32, i32
  }
  func.func @transform_13(%arg0: i32, %arg1: i32) -> (i32, i32, i32) {
    %c0_i32 = arith.constant 0 : i32
    %c0_i32_0 = arith.constant 0 : i32
    %c0_i32_1 = arith.constant 0 : i32
    %c0_i32_2 = arith.constant 0 : i32
    return %c0_i32, %c0_i32_0, %c0_i32_1 : i32, i32, i32
  }
  func.func @transform_14(%arg0: i32, %arg1: i32) -> (i32, i32) {
    %c0_i32 = arith.constant 0 : i32
    %c0_i32_0 = arith.constant 0 : i32
    %c0_i32_1 = arith.constant 0 : i32
    return %c0_i32, %c0_i32_0 : i32, i32
  }
  func.func @transform_15(%arg0: i32, %arg1: i32) -> (i32, i32, i32) {
    %c0_i32 = arith.constant 0 : i32
    %c0_i32_0 = arith.constant 0 : i32
    return %arg0, %c0_i32, %arg1 : i32, i32, i32
  }
}

</mosaic_0001>

<llo_original>
// kernel: tcn_forward.1
$region0: #{tcn_forward.1}
  #allocation0 [shape = 'u32[]', space=smem, size = 0x4, offset = 0x4, fixed_abs, tag = 'smem constant byte address 0x4 - core index']
  #allocation1 [shape = 'u32[144,128]{1,0:T(1,128)}', space=vmem, size = 0x12000, scoped, tag = 'internal scratch']
  #allocation2 [shape = 'f32[8,256]{1,0:T(8,128)}', space=vmem, size = 0x2000, scoped, tag = 'scratch operand']
  #allocation3 [shape = 'f32[16,256]{1,0:T(8,128)}', space=vmem, size = 0x4000, scoped, tag = 'scratch operand']
  #allocation4 [shape = 'f32[16,256]{1,0:T(8,128)}', space=vmem, size = 0x4000, scoped, tag = 'scratch operand']
  #allocation5 [shape = 'f32[16,256]{1,0:T(8,128)}', space=vmem, size = 0x4000, scoped, tag = 'scratch operand']
  #allocation6 [shape = 'f32[16,256]{1,0:T(8,128)}', space=vmem, size = 0x4000, scoped, tag = 'scratch operand']
  #allocation7 [shape = 'f32[16,256]{1,0:T(8,128)}', space=vmem, size = 0x4000, scoped, tag = 'scratch operand']
  %s0 = inlined_call_operand.vmem [shape: f32[2,8,256], index: 0, kind: input, shape index: {}]
  %s1 = inlined_call_operand.vmem [shape: bf16[2,16,8], index: 1, kind: input, shape index: {}]
  %s2 = inlined_call_operand.vmem [shape: f32[16,1], index: 2, kind: input, shape index: {}]
  %s3 = inlined_call_operand.vmem [shape: bf16[2,16,16], index: 3, kind: input, shape index: {}]
  %s4 = inlined_call_operand.vmem [shape: f32[16,1], index: 4, kind: input, shape index: {}]
  %s5 = inlined_call_operand.vmem [shape: bf16[16,8], index: 5, kind: input, shape index: {}]
  %s6 = inlined_call_operand.vmem [shape: f32[16,1], index: 6, kind: input, shape index: {}]
  %s7 = inlined_call_operand.vmem [shape: bf16[2,16,16], index: 7, kind: input, shape index: {}]
  %s8 = inlined_call_operand.vmem [shape: f32[16,1], index: 8, kind: input, shape index: {}]
  %s9 = inlined_call_operand.vmem [shape: bf16[2,16,16], index: 9, kind: input, shape index: {}]
  %s10 = inlined_call_operand.vmem [shape: f32[16,1], index: 10, kind: input, shape index: {}]
  %s11 = inlined_call_operand.vmem [shape: bf16[2,16,16], index: 11, kind: input, shape index: {}]
  %s12 = inlined_call_operand.vmem [shape: f32[16,1], index: 12, kind: input, shape index: {}]
  %s13 = inlined_call_operand.vmem [shape: bf16[2,16,16], index: 13, kind: input, shape index: {}]
  %s14 = inlined_call_operand.vmem [shape: f32[16,1], index: 14, kind: input, shape index: {}]
  %s15 = inlined_call_operand.hbm [shape: f32[2,16,256], index: 15, kind: output, shape index: {}]
  %s16 = sld [smem:[#allocation0]]
  $region97: #{tcn_forward.1} parent=0
    _
  %s18 = ssub.s32 1, %s16
  %s19 = scalar_select 0, %s18, %s16
  $region1: #{tcn_forward.1} parent=0
    #allocation8 [shape = 'u8[16384]{0}', space=vmem, size = 0x4000, scoped, tag = 'output window, operand 0']
    #allocation9 [shape = 's32[2]{0}', space=sflag, size = 0x8, scoped, tag = 'scoped memory for tcn_forward.1']
    %20 = vsyncpa [#allocation9], 0
    %s21 = scalar_lea.sflag [#allocation9], 1
    %22 = vsyncpa %s21, 0
    loop: start=0, step=1, limit=6
    $region2: #{tcn_forward.1} parent=1 // loop_pre_header
      _
    $region3: #{tcn_forward.1} parent=1 // loop_header
      %s24 = sphi 0, %s28
      %p25 = scmp.ge.s32.totalorder %s24, 6
      %s31 = sphi 0, %s43
      %s32 = sphi 0, %s39
      %s33 = sphi 0, %s31
      %s34 = sphi 0, %s32
      %s35 = sphi 0, %s33
      %s36 = sphi 0, %s34
      %s48 = sphi 0, %s50
      %s51 = sphi 0, %s48
      %s52 = sphi 0, %s51
      %s68 = sphi 0, %s52
      %s72 = sphi 0, %s72
      %s74 = sphi 0, %s72
      %s75 = sphi 0, %s74
      %s89 = sphi 0, %s75
      %s93 = sphi 0, %s93
      %s95 = sphi 0, %s93
      %s96 = sphi 0, %s95
      %s110 = sphi 0, %s96
      %s114 = sphi 0, %s114
      %s116 = sphi 0, %s114
      %s117 = sphi 0, %s116
      %s131 = sphi 0, %s117
      %s135 = sphi 0, %s135
      %s137 = sphi 0, %s135
      %s138 = sphi 0, %s137
      %s152 = sphi 0, %s138
      %s156 = sphi 0, %s156
      %s158 = sphi 0, %s156
      %s159 = sphi 0, %s158
      %s173 = sphi 0, %s159
      %s177 = sphi 0, %s177
      %s179 = sphi 0, %s177
      %s180 = sphi 0, %s179
      %s194 = sphi 0, %s180
      %s198 = sphi 0, %s198
      %s200 = sphi 0, %s198
      %s201 = sphi 0, %s200
      %s215 = sphi 0, %s201
      %s219 = sphi 0, %s219
      %s221 = sphi 0, %s219
      %s222 = sphi 0, %s221
      %s236 = sphi 0, %s222
      %s240 = sphi 0, %s240
      %s242 = sphi 0, %s240
      %s243 = sphi 0, %s242
      %s257 = sphi 0, %s243
      %s261 = sphi 0, %s261
      %s263 = sphi 0, %s261
      %s264 = sphi 0, %s263
      %s278 = sphi 0, %s264
      %s282 = sphi 0, %s282
      %s284 = sphi 0, %s282
      %s285 = sphi 0, %s284
      %s299 = sphi 0, %s285
      %s303 = sphi 0, %s303
      %s305 = sphi 0, %s303
      %s306 = sphi 0, %s305
      %s320 = sphi 0, %s306
      %s324 = sphi 0, %s324
      %s326 = sphi 0, %s324
      %s327 = sphi 0, %s326
      %s341 = sphi 0, %s327
      %s345 = sphi 0, %s345
      %s347 = sphi 0, %s345
      %s348 = sphi 0, %s347
      %s362 = sphi 0, %s348
      %s370 = sphi 0, %s372
      %s373 = sphi 0, %s370
      %s374 = sphi 0, %s373
      %s390 = sphi 0, %s374
    $region4: #{tcn_forward.1} parent=1 // loop_header_branch
      %27 = sbr.rel (%p25) target = $region8
    $region5: #{tcn_forward.1} parent=1 // loop_body
      %s29 = ssub.s32 %s24, 1
      %s30 = ssub.s32 %s24, 2
      %s37 = sadd.s32 1, %s32
      %p38 = scmp.ge.s32.totalorder %s37, 2
      %s39 = scalar_select %p38, 0, %s37
      %s40 = sadd.s32 1, %s31
      %s41 = scalar_select %p38, %s40, %s31
      %p42 = scmp.ge.s32.totalorder %s41, 2
      %s43 = scalar_select %p42, 0, %s41
      %s44 = ssub.s32 %s31, %s43
      %s45 = ssub.s32 %s32, %s39
      %s46 = sor.u32 %s44, %s45
      %p47 = scmp.eq.s32.totalorder %s46, 0
      %s49 = sadd.s32 %s48, 1
      %s50 = scalar_select %p47, %s48, %s49
      %p53 = pneg %p47
      %p54 = scmp.eq.s32.totalorder %s24, 3
      %p55 = por %p53, %p54
      %p56 = scmp.ne.s32.totalorder %s48, %s51
      %p57 = scmp.eq.s32.totalorder %s24, 0
      %p58 = por %p56, %p57
      %p59 = scmp.ne.s32.totalorder %s48, %s51
      %p60 = scmp.eq.s32.totalorder %s29, 3
      %p61 = por %p59, %p60
      %p62 = scmp.ne.s32.totalorder %s51, %s52
      %p63 = scmp.eq.s32.totalorder %s29, 0
      %p64 = por %p62, %p63
      %p65 = scmp.ne.s32.totalorder %s51, %s52
      %p66 = scmp.eq.s32.totalorder %s30, 3
      %p67 = por %p65, %p66
      %p69 = scmp.ne.s32.totalorder %s52, %s68
      %p70 = scmp.eq.s32.totalorder %s30, 0
      %p71 = por %p69, %p70
      %s73 = sadd.s32 %s72, 1
      %p76 = scmp.eq.s32.totalorder %s24, 3
      %p77 = scmp.ne.s32.totalorder %s72, %s74
      %p78 = scmp.eq.s32.totalorder %s24, 0
      %p79 = por %p77, %p78
      %p80 = scmp.ne.s32.totalorder %s72, %s74
      %p81 = scmp.eq.s32.totalorder %s29, 3
      %p82 = por %p80, %p81
      %p83 = scmp.ne.s32.totalorder %s74, %s75
      %p84 = scmp.eq.s32.totalorder %s29, 0
      %p85 = por %p83, %p84
      %p86 = scmp.ne.s32.totalorder %s74, %s75
      %p87 = scmp.eq.s32.totalorder %s30, 3
      %p88 = por %p86, %p87
      %p90 = scmp.ne.s32.totalorder %s75, %s89
      %p91 = scmp.eq.s32.totalorder %s30, 0
      %p92 = por %p90, %p91
      %s94 = sadd.s32 %s93, 1
      %p97 = scmp.eq.s32.totalorder %s24, 3
      %p98 = scmp.ne.s32.totalorder %s93, %s95
      %p99 = scmp.eq.s32.totalorder %s24, 0
      %p100 = por %p98, %p99
      %p101 = scmp.ne.s32.totalorder %s93, %s95
      %p102 = scmp.eq.s32.totalorder %s29, 3
      %p103 = por %p101, %p102
      %p104 = scmp.ne.s32.totalorder %s95, %s96
      %p105 = scmp.eq.s32.totalorder %s29, 0
      %p106 = por %p104, %p105
      %p107 = scmp.ne.s32.totalorder %s95, %s96
      %p108 = scmp.eq.s32.totalorder %s30, 3
      %p109 = por %p107, %p108
      %p111 = scmp.ne.s32.totalorder %s96, %s110
      %p112 = scmp.eq.s32.totalorder %s30, 0
      %p113 = por %p111, %p112
      %s115 = sadd.s32 %s114, 1
      %p118 = scmp.eq.s32.totalorder %s24, 3
      %p119 = scmp.ne.s32.totalorder %s114, %s116
      %p120 = scmp.eq.s32.totalorder %s24, 0
      %p121 = por %p119, %p120
      %p122 = scmp.ne.s32.totalorder %s114, %s116
      %p123 = scmp.eq.s32.totalorder %s29, 3
      %p124 = por %p122, %p123
      %p125 = scmp.ne.s32.totalorder %s116, %s117
      %p126 = scmp.eq.s32.totalorder %s29, 0
      %p127 = por %p125, %p126
      %p128 = scmp.ne.s32.totalorder %s116, %s117
      %p129 = scmp.eq.s32.totalorder %s30, 3
      %p130 = por %p128, %p129
      %p132 = scmp.ne.s32.totalorder %s117, %s131
      %p133 = scmp.eq.s32.totalorder %s30, 0
      %p134 = por %p132, %p133
      %s136 = sadd.s32 %s135, 1
      %p139 = scmp.eq.s32.totalorder %s24, 3
      %p140 = scmp.ne.s32.totalorder %s135, %s137
      %p141 = scmp.eq.s32.totalorder %s24, 0
      %p142 = por %p140, %p141
      %p143 = scmp.ne.s32.totalorder %s135, %s137
      %p144 = scmp.eq.s32.totalorder %s29, 3
      %p145 = por %p143, %p144
      %p146 = scmp.ne.s32.totalorder %s137, %s138
      %p147 = scmp.eq.s32.totalorder %s29, 0
      %p148 = por %p146, %p147
      %p149 = scmp.ne.s32.totalorder %s137, %s138
      %p150 = scmp.eq.s32.totalorder %s30, 3
      %p151 = por %p149, %p150
      %p153 = scmp.ne.s32.totalorder %s138, %s152
      %p154 = scmp.eq.s32.totalorder %s30, 0
      %p155 = por %p153, %p154
      %s157 = sadd.s32 %s156, 1
      %p160 = scmp.eq.s32.totalorder %s24, 3
      %p161 = scmp.ne.s32.totalorder %s156, %s158
      %p162 = scmp.eq.s32.totalorder %s24, 0
      %p163 = por %p161, %p162
      %p164 = scmp.ne.s32.totalorder %s156, %s158
      %p165 = scmp.eq.s32.totalorder %s29, 3
      %p166 = por %p164, %p165
      %p167 = scmp.ne.s32.totalorder %s158, %s159
      %p168 = scmp.eq.s32.totalorder %s29, 0
      %p169 = por %p167, %p168
      %p170 = scmp.ne.s32.totalorder %s158, %s159
      %p171 = scmp.eq.s32.totalorder %s30, 3
      %p172 = por %p170, %p171
      %p174 = scmp.ne.s32.totalorder %s159, %s173
      %p175 = scmp.eq.s32.totalorder %s30, 0
      %p176 = por %p174, %p175
      %s178 = sadd.s32 %s177, 1
      %p181 = scmp.eq.s32.totalorder %s24, 3
      %p182 = scmp.ne.s32.totalorder %s177, %s179
      %p183 = scmp.eq.s32.totalorder %s24, 0
      %p184 = por %p182, %p183
      %p185 = scmp.ne.s32.totalorder %s177, %s179
      %p186 = scmp.eq.s32.totalorder %s29, 3
      %p187 = por %p185, %p186
      %p188 = scmp.ne.s32.totalorder %s179, %s180
      %p189 = scmp.eq.s32.totalorder %s29, 0
      %p190 = por %p188, %p189
      %p191 = scmp.ne.s32.totalorder %s179, %s180
      %p192 = scmp.eq.s32.totalorder %s30, 3
      %p193 = por %p191, %p192
      %p195 = scmp.ne.s32.totalorder %s180, %s194
      %p196 = scmp.eq.s32.totalorder %s30, 0
      %p197 = por %p195, %p196
      %s199 = sadd.s32 %s198, 1
      %p202 = scmp.eq.s32.totalorder %s24, 3
      %p203 = scmp.ne.s32.totalorder %s198, %s200
      %p204 = scmp.eq.s32.totalorder %s24, 0
      %p205 = por %p203, %p204
      %p206 = scmp.ne.s32.totalorder %s198, %s200
      %p207 = scmp.eq.s32.totalorder %s29, 3
      %p208 = por %p206, %p207
      %p209 = scmp.ne.s32.totalorder %s200, %s201
      %p210 = scmp.eq.s32.totalorder %s29, 0
      %p211 = por %p209, %p210
      %p212 = scmp.ne.s32.totalorder %s200, %s201
      %p213 = scmp.eq.s32.totalorder %s30, 3
      %p214 = por %p212, %p213
      %p216 = scmp.ne.s32.totalorder %s201, %s215
      %p217 = scmp.eq.s32.totalorder %s30, 0
      %p218 = por %p216, %p217
      %s220 = sadd.s32 %s219, 1
      %p223 = scmp.eq.s32.totalorder %s24, 3
      %p224 = scmp.ne.s32.totalorder %s219, %s221
      %p225 = scmp.eq.s32.totalorder %s24, 0
      %p226 = por %p224, %p225
      %p227 = scmp.ne.s32.totalorder %s219, %s221
      %p228 = scmp.eq.s32.totalorder %s29, 3
      %p229 = por %p227, %p228
      %p230 = scmp.ne.s32.totalorder %s221, %s222
      %p231 = scmp.eq.s32.totalorder %s29, 0
      %p232 = por %p230, %p231
      %p233 = scmp.ne.s32.totalorder %s221, %s222
      %p234 = scmp.eq.s32.totalorder %s30, 3
      %p235 = por %p233, %p234
      %p237 = scmp.ne.s32.totalorder %s222, %s236
      %p238 = scmp.eq.s32.totalorder %s30, 0
      %p239 = por %p237, %p238
      %s241 = sadd.s32 %s240, 1
      %p244 = scmp.eq.s32.totalorder %s24, 3
      %p245 = scmp.ne.s32.totalorder %s240, %s242
      %p246 = scmp.eq.s32.totalorder %s24, 0
      %p247 = por %p245, %p246
      %p248 = scmp.ne.s32.totalorder %s240, %s242
      %p249 = scmp.eq.s32.totalorder %s29, 3
      %p250 = por %p248, %p249
      %p251 = scmp.ne.s32.totalorder %s242, %s243
      %p252 = scmp.eq.s32.totalorder %s29, 0
      %p253 = por %p251, %p252
      %p254 = scmp.ne.s32.totalorder %s242, %s243
      %p255 = scmp.eq.s32.totalorder %s30, 3
      %p256 = por %p254, %p255
      %p258 = scmp.ne.s32.totalorder %s243, %s257
      %p259 = scmp.eq.s32.totalorder %s30, 0
      %p260 = por %p258, %p259
      %s262 = sadd.s32 %s261, 1
      %p265 = scmp.eq.s32.totalorder %s24, 3
      %p266 = scmp.ne.s32.totalorder %s261, %s263
      %p267 = scmp.eq.s32.totalorder %s24, 0
      %p268 = por %p266, %p267
      %p269 = scmp.ne.s32.totalorder %s261, %s263
      %p270 = scmp.eq.s32.totalorder %s29, 3
      %p271 = por %p269, %p270
      %p272 = scmp.ne.s32.totalorder %s263, %s264
      %p273 = scmp.eq.s32.totalorder %s29, 0
      %p274 = por %p272, %p273
      %p275 = scmp.ne.s32.totalorder %s263, %s264
      %p276 = scmp.eq.s32.totalorder %s30, 3
      %p277 = por %p275, %p276
      %p279 = scmp.ne.s32.totalorder %s264, %s278
      %p280 = scmp.eq.s32.totalorder %s30, 0
      %p281 = por %p279, %p280
      %s283 = sadd.s32 %s282, 1
      %p286 = scmp.eq.s32.totalorder %s24, 3
      %p287 = scmp.ne.s32.totalorder %s282, %s284
      %p288 = scmp.eq.s32.totalorder %s24, 0
      %p289 = por %p287, %p288
      %p290 = scmp.ne.s32.totalorder %s282, %s284
      %p291 = scmp.eq.s32.totalorder %s29, 3
      %p292 = por %p290, %p291
      %p293 = scmp.ne.s32.totalorder %s284, %s285
      %p294 = scmp.eq.s32.totalorder %s29, 0
      %p295 = por %p293, %p294
      %p296 = scmp.ne.s32.totalorder %s284, %s285
      %p297 = scmp.eq.s32.totalorder %s30, 3
      %p298 = por %p296, %p297
      %p300 = scmp.ne.s32.totalorder %s285, %s299
      %p301 = scmp.eq.s32.totalorder %s30, 0
      %p302 = por %p300, %p301
      %s304 = sadd.s32 %s303, 1
      %p307 = scmp.eq.s32.totalorder %s24, 3
      %p308 = scmp.ne.s32.totalorder %s303, %s305
      %p309 = scmp.eq.s32.totalorder %s24, 0
      %p310 = por %p308, %p309
      %p311 = scmp.ne.s32.totalorder %s303, %s305
      %p312 = scmp.eq.s32.totalorder %s29, 3
      %p313 = por %p311, %p312
      %p314 = scmp.ne.s32.totalorder %s305, %s306
      %p315 = scmp.eq.s32.totalorder %s29, 0
      %p316 = por %p314, %p315
      %p317 = scmp.ne.s32.totalorder %s305, %s306
      %p318 = scmp.eq.s32.totalorder %s30, 3
      %p319 = por %p317, %p318
      %p321 = scmp.ne.s32.totalorder %s306, %s320
      %p322 = scmp.eq.s32.totalorder %s30, 0
      %p323 = por %p321, %p322
      %s325 = sadd.s32 %s324, 1
      %p328 = scmp.eq.s32.totalorder %s24, 3
      %p329 = scmp.ne.s32.totalorder %s324, %s326
      %p330 = scmp.eq.s32.totalorder %s24, 0
      %p331 = por %p329, %p330
      %p332 = scmp.ne.s32.totalorder %s324, %s326
      %p333 = scmp.eq.s32.totalorder %s29, 3
      %p334 = por %p332, %p333
      %p335 = scmp.ne.s32.totalorder %s326, %s327
      %p336 = scmp.eq.s32.totalorder %s29, 0
      %p337 = por %p335, %p336
      %p338 = scmp.ne.s32.totalorder %s326, %s327
      %p339 = scmp.eq.s32.totalorder %s30, 3
      %p340 = por %p338, %p339
      %p342 = scmp.ne.s32.totalorder %s327, %s341
      %p343 = scmp.eq.s32.totalorder %s30, 0
      %p344 = por %p342, %p343
      %s346 = sadd.s32 %s345, 1
      %p349 = scmp.eq.s32.totalorder %s24, 3
      %p350 = scmp.ne.s32.totalorder %s345, %s347
      %p351 = scmp.eq.s32.totalorder %s24, 0
      %p352 = por %p350, %p351
      %p353 = scmp.ne.s32.totalorder %s345, %s347
      %p354 = scmp.eq.s32.totalorder %s29, 3
      %p355 = por %p353, %p354
      %p356 = scmp.ne.s32.totalorder %s347, %s348
      %p357 = scmp.eq.s32.totalorder %s29, 0
      %p358 = por %p356, %p357
      %p359 = scmp.ne.s32.totalorder %s347, %s348
      %p360 = scmp.eq.s32.totalorder %s30, 3
      %p361 = por %p359, %p360
      %p363 = scmp.ne.s32.totalorder %s348, %s362
      %p364 = scmp.eq.s32.totalorder %s30, 0
      %p365 = por %p363, %p364
      %s366 = ssub.s32 %s31, %s43
      %s367 = ssub.s32 %s32, %s39
      %s368 = sor.u32 %s366, %s367
      %p369 = scmp.eq.s32.totalorder %s368, 0
      %s371 = sadd.s32 %s370, 1
      %s372 = scalar_select %p369, %s370, %s371
      %p375 = pneg %p369
      %p376 = scmp.eq.s32.totalorder %s24, 3
      %p377 = por %p375, %p376
      %p378 = scmp.ne.s32.totalorder %s370, %s373
      %p379 = scmp.eq.s32.totalorder %s24, 0
      %p380 = por %p378, %p379
      %p381 = scmp.ne.s32.totalorder %s370, %s373
      %p382 = scmp.eq.s32.totalorder %s29, 3
      %p383 = por %p381, %p382
      %p384 = scmp.ne.s32.totalorder %s373, %s374
      %p385 = scmp.eq.s32.totalorder %s29, 0
      %p386 = por %p384, %p385
      %p387 = scmp.ne.s32.totalorder %s373, %s374
      %p388 = scmp.eq.s32.totalorder %s30, 3
      %p389 = por %p387, %p388
      %p391 = scmp.ne.s32.totalorder %s374, %s390
      %p392 = scmp.eq.s32.totalorder %s30, 0
      %p393 = por %p391, %p392
      %p394 = scmp.le.s32.totalorder 1, %s24
      %p395 = scmp.lt.s32.totalorder %s24, 5
      %p396 = pnand %p394, %p395
      %p397 = pneg %p396
      // Predicated region
      $region9: #{tcn_forward.1} parent=5 // pred_check
        _
      $region10: #{tcn_forward.1} parent=5 // pred_check_branch
        %399 = sbr.rel (%p396) target = $region12
      $region11: #{tcn_forward.1} parent=5 // pred_region
        %s400 = ssub.s32 %s24, 1
        // Predicated region
        $region13: #{tcn_forward.1} parent=11 // pred_check
          %p401 = pneg %p85
        $region14: #{tcn_forward.1} parent=11 // pred_check_branch
          %403 = sbr.rel (%p401) target = $region16
        $region15: #{tcn_forward.1} parent=11 // pred_region
          _
        $region16: #{tcn_forward.1} parent=11 // pred_fallthru
          _
        // Predicated region
        $region17: #{tcn_forward.1} parent=11 // pred_check
          %p404 = pneg %p106
        $region18: #{tcn_forward.1} parent=11 // pred_check_branch
          %406 = sbr.rel (%p404) target = $region20
        $region19: #{tcn_forward.1} parent=11 // pred_region
          _
        $region20: #{tcn_forward.1} parent=11 // pred_fallthru
          _
        // Predicated region
        $region21: #{tcn_forward.1} parent=11 // pred_check
          %p407 = pneg %p127
        $region22: #{tcn_forward.1} parent=11 // pred_check_branch
          %409 = sbr.rel (%p407) target = $region24
        $region23: #{tcn_forward.1} parent=11 // pred_region
          _
        $region24: #{tcn_forward.1} parent=11 // pred_fallthru
          _
        // Predicated region
        $region25: #{tcn_forward.1} parent=11 // pred_check
          %p410 = pneg %p148
        $region26: #{tcn_forward.1} parent=11 // pred_check_branch
          %412 = sbr.rel (%p410) target = $region28
        $region27: #{tcn_forward.1} parent=11 // pred_region
          _
        $region28: #{tcn_forward.1} parent=11 // pred_fallthru
          _
        // Predicated region
        $region29: #{tcn_forward.1} parent=11 // pred_check
          %p413 = pneg %p169
        $region30: #{tcn_forward.1} parent=11 // pred_check_branch
          %415 = sbr.rel (%p413) target = $region32
        $region31: #{tcn_forward.1} parent=11 // pred_region
          _
        $region32: #{tcn_forward.1} parent=11 // pred_fallthru
          _
        // Predicated region
        $region33: #{tcn_forward.1} parent=11 // pred_check
          %p416 = pneg %p190
        $region34: #{tcn_forward.1} parent=11 // pred_check_branch
          %418 = sbr.rel (%p416) target = $region36
        $region35: #{tcn_forward.1} parent=11 // pred_region
          _
        $region36: #{tcn_forward.1} parent=11 // pred_fallthru
          _
        // Predicated region
        $region37: #{tcn_forward.1} parent=11 // pred_check
          %p419 = pneg %p211
        $region38: #{tcn_forward.1} parent=11 // pred_check_branch
          %421 = sbr.rel (%p419) target = $region40
        $region39: #{tcn_forward.1} parent=11 // pred_region
          _
        $region40: #{tcn_forward.1} parent=11 // pred_fallthru
          _
        // Predicated region
        $region41: #{tcn_forward.1} parent=11 // pred_check
          %p422 = pneg %p232
        $region42: #{tcn_forward.1} parent=11 // pred_check_branch
          %424 = sbr.rel (%p422) target = $region44
        $region43: #{tcn_forward.1} parent=11 // pred_region
          _
        $region44: #{tcn_forward.1} parent=11 // pred_fallthru
          _
        // Predicated region
        $region45: #{tcn_forward.1} parent=11 // pred_check
          %p425 = pneg %p253
        $region46: #{tcn_forward.1} parent=11 // pred_check_branch
          %427 = sbr.rel (%p425) target = $region48
        $region47: #{tcn_forward.1} parent=11 // pred_region
          _
        $region48: #{tcn_forward.1} parent=11 // pred_fallthru
          _
        // Predicated region
        $region49: #{tcn_forward.1} parent=11 // pred_check
          %p428 = pneg %p274
        $region50: #{tcn_forward.1} parent=11 // pred_check_branch
          %430 = sbr.rel (%p428) target = $region52
        $region51: #{tcn_forward.1} parent=11 // pred_region
          _
        $region52: #{tcn_forward.1} parent=11 // pred_fallthru
          _
        // Predicated region
        $region53: #{tcn_forward.1} parent=11 // pred_check
          %p431 = pneg %p295
        $region54: #{tcn_forward.1} parent=11 // pred_check_branch
          %433 = sbr.rel (%p431) target = $region56
        $region55: #{tcn_forward.1} parent=11 // pred_region
          _
        $region56: #{tcn_forward.1} parent=11 // pred_fallthru
          _
        // Predicated region
        $region57: #{tcn_forward.1} parent=11 // pred_check
          %p434 = pneg %p316
        $region58: #{tcn_forward.1} parent=11 // pred_check_branch
          %436 = sbr.rel (%p434) target = $region60
        $region59: #{tcn_forward.1} parent=11 // pred_region
          _
        $region60: #{tcn_forward.1} parent=11 // pred_fallthru
          _
        // Predicated region
        $region61: #{tcn_forward.1} parent=11 // pred_check
          %p437 = pneg %p337
        $region62: #{tcn_forward.1} parent=11 // pred_check_branch
          %439 = sbr.rel (%p437) target = $region64
        $region63: #{tcn_forward.1} parent=11 // pred_region
          _
        $region64: #{tcn_forward.1} parent=11 // pred_fallthru
          _
        // Predicated region
        $region65: #{tcn_forward.1} parent=11 // pred_check
          %p440 = pneg %p358
        $region66: #{tcn_forward.1} parent=11 // pred_check_branch
          %442 = sbr.rel (%p440) target = $region68
        $region67: #{tcn_forward.1} parent=11 // pred_region
          _
        $region68: #{tcn_forward.1} parent=11 // pred_fallthru
          _
      $region12: #{tcn_forward.1} parent=5 // pred_fallthru
        _
      %p443 = scmp.lt.s32.totalorder %s24, 4
      // Predicated region
      $region69: #{tcn_forward.1} parent=5 // pred_check
        %p444 = pneg %p443
      $region70: #{tcn_forward.1} parent=5 // pred_check_branch
        %446 = sbr.rel (%p444) target = $region72
      $region71: #{tcn_forward.1} parent=5 // pred_region
        // Predicated region
        $region73: #{tcn_forward.1} parent=71 // pred_check
          %p447 = pneg %p58
        $region74: #{tcn_forward.1} parent=71 // pred_check_branch
          %449 = sbr.rel (%p447) target = $region76
        $region75: #{tcn_forward.1} parent=71 // pred_region
          %p450 = scmp.lt.s32.totalorder %s31, 1
          %s451 = scalar_select %p450, %s31, 1
          %p452 = scmp.lt.s32.totalorder %s32, 1
          %s453 = scalar_select %p452, %s32, 1
          %s454 = smul.addr %s451, 2
          %s455 = sadd.s32 %s453, %s454
          %s456 = smul.addr %s455, 8
          %s457 = scalar_lea.vmem %s0, %s456
        $region76: #{tcn_forward.1} parent=71 // pred_fallthru
          _
      $region72: #{tcn_forward.1} parent=5 // pred_fallthru
        _
      %p458 = scmp.le.s32.totalorder 1, %s24
      %p459 = scmp.lt.s32.totalorder %s24, 5
      %p460 = pnand %p458, %p459
      %p461 = pneg %p460
      // Predicated region
      $region77: #{tcn_forward.1} parent=5 // pred_check
        _
      $region78: #{tcn_forward.1} parent=5 // pred_check_branch
        %463 = sbr.rel (%p460) target = $region80
      $region79: #{tcn_forward.1} parent=5 // pred_region
        %s464 = ssub.s32 %s24, 1
        %p465 = scmp.lt.s32.totalorder %s33, 1
        %s466 = scalar_select %p465, %s33, 1
        %p467 = scmp.lt.s32.totalorder %s34, 1
        %s468 = scalar_select %p467, %s34, 1
        %s469 = smul.addr %s466, 2
        %s470 = sadd.s32 %s468, %s469
        %s471 = smul.addr %s470, 8
        %s472 = scalar_lea.vmem %s0, %s471
        %p473 = pneg %p64
        %p474 = pneg %p61
        %p475 = pneg %p85
        %p476 = pneg %p82
        %p477 = pneg %p106
        %p478 = pneg %p103
        %p479 = pneg %p127
        %p480 = pneg %p124
        %p481 = pneg %p148
        %p482 = pneg %p145
        %p483 = pneg %p169
        %p484 = pneg %p166
        %p485 = pneg %p190
        %p486 = pneg %p187
        %p487 = pneg %p211
        %p488 = pneg %p208
        %p489 = pneg %p232
        %p490 = pneg %p229
        %p491 = pneg %p253
        %p492 = pneg %p250
        %p493 = pneg %p274
        %p494 = pneg %p271
        %p495 = pneg %p295
        %p496 = pneg %p292
        %p497 = pneg %p316
        %p498 = pneg %p313
        %p499 = pneg %p337
        %p500 = pneg %p334
        %p501 = pneg %p358
        %p502 = pneg %p355
        %p503 = pneg %p386
        %p504 = pneg %p383
        %s505 = sand.u32 %s373, 1
        %s506 = scalar_lea.sflag [#allocation9], %s505
        %s507 = sand.u32 %s373, 1
        %s508 = smul.addr %s507, 16
        %s509 = scalar_lea.vmem [#allocation8], %s508
        %p510 = scmp.lt.s32.totalorder %s33, 1
        %s511 = scalar_select %p510, %s33, 1
        %p512 = scmp.lt.s32.totalorder %s34, 1
        %s513 = scalar_select %p512, %s34, 1
        %s514 = smul.addr %s511, 2
        %s515 = sadd.s32 %s513, %s514
        %s516 = smul.addr %s515, 8
        %s517 = scalar_lea.vmem %s0, %s516
        %p519 = scmp.eq.s32.totalorder %s34, 0
        // Predicated region
        $region81: #{tcn_forward.1} parent=79 // pred_check
          %p520 = pneg %p519
        $region82: #{tcn_forward.1} parent=79 // pred_check_branch
          %522 = sbr.rel (%p520) target = $region84
        $region83: #{tcn_forward.1} parent=79 // pred_region
          %vm523 = vcmask 1048568
          %524 = vst.msk [vmem:[#allocation2] sm:$0xff] %vm523, 0.0
          %525 = vst.msk [vmem:[#allocation3] sm:$0xff] %vm523, 0.0
          %526 = vst.msk [vmem:[#allocation3 + $0x10] sm:$0xff] %vm523, 0.0
          %vm527 = vcmask 1048560
          %528 = vst.msk [vmem:[#allocation4] sm:$0xff] %vm527, 0.0
          %529 = vst.msk [vmem:[#allocation4 + $0x10] sm:$0xff] %vm527, 0.0
          %530 = vst.msk [vmem:[#allocation5] sm:$0xff] %vm527, 0.0
          %531 = vst.msk [vmem:[#allocation5 + $0x10] sm:$0xff] %vm527, 0.0
          %vm532 = vcmask 1048544
          %533 = vst.msk [vmem:[#allocation6] sm:$0xff] %vm532, 0.0
          %534 = vst.msk [vmem:[#allocation6 + $0x10] sm:$0xff] %vm532, 0.0
          %535 = vst.msk [vmem:[#allocation7] sm:$0xff] %vm532, 0.0
          %536 = vst.msk [vmem:[#allocation7 + $0x10] sm:$0xff] %vm532, 0.0
        $region84: #{tcn_forward.1} parent=79 // pred_fallthru
          _
        %v537 = vld [vmem:[%s517] sm:$0xff]
        %v538 = vpack.c.bf16 %v537, %v537
        %539 = vst [vmem:[#allocation2 + $0x8] sm:$0xff] %v537
        %s540 = scalar_lea.vmem %s1, 8
        %v541 = vld [vmem:[%s540] sm:$0xf]
        %v542 = vld [vmem:[%s540 + $0x4] sm:$0xf]
        %v543 = vld [vmem:[#allocation2] sm:$0xff]
        %v544 = vld [vmem:[#allocation2 + $0x8] sm:$0xff]
        %v545 = vpack.c.bf16 %v543, %v543
        %v546 = vpack.c.bf16 %v544, %v544
        %v547 = vld [vmem:[%s1] sm:$0xf]
        %v548 = vld [vmem:[%s1 + $0x4] sm:$0xf]
        %v551 = vunpack.c.l.b16 %v547
        %v552 = vunpack.c.l.b16 %v548
        %v553 = vpack.c.b16 %v552, %v551
        %556 = vrot.lane.b32.xlu0 %v545, 1
        %v557 = vpop.permute.xlu0 %556
        %558 = vrot.lane.b32.xlu0 %v546, 1
        %v559 = vpop.permute.xlu0 %558
        %vm560 = vcmask 7168
        %v561 = vsel %vm560, %v557, %v559
        %vm562 = vcmask 64512
        %v564 = vsel %vm562, %v553, 0
        %vm566 = vcmask 1043456
        %v568 = vsel %vm566, %v561, 0
        %570 = vmatprep.subr.bf16.mxu0 0
        %571 = vmatpush1.bf16.msra.mxu0 0
        %572 = vmatprep.subr.bf16.mxu0 0
        %573 = vmatpush1.bf16.msra.mxu0 0
        %574 = vmatprep.subr.bf16.mxu0 0
        %575 = vmatpush1.bf16.msra.mxu0 0
        %576 = vmatprep.subr.bf16.mxu0 0
        %577 = vmatpush1.bf16.msra.mxu0 0
        %578 = vmatprep.subr.bf16.mxu0 0
        %579 = vmatpush1.bf16.msra.mxu0 0
        %580 = vmatprep.subr.bf16.mxu0 0
        %581 = vmatpush1.bf16.msra.mxu0 0
        %582 = vmatprep.subr.bf16.mxu0 0
        %583 = vmatpush1.bf16.msra.mxu0 0
        %584 = vmatprep.subr.bf16.mxu0 0
        %585 = vmatpush1.bf16.msra.mxu0 %v568
        %586 = vmatprep.subr.bf16.mxu0 0
        %587 = vmatpush2.bf16.msra.mxu0 0
        %588 = vmatprep.subr.bf16.mxu0 0
        %589 = vmatpush2.bf16.msra.mxu0 0
        %590 = vmatprep.subr.bf16.mxu0 0
        %591 = vmatpush2.bf16.msra.mxu0 0
        %592 = vmatprep.subr.bf16.mxu0 0
        %593 = vmatpush2.bf16.msra.mxu0 0
        %594 = vmatprep.subr.bf16.mxu0 0
        %595 = vmatpush2.bf16.msra.mxu0 0
        %596 = vmatprep.subr.bf16.mxu0 0
        %597 = vmatpush2.bf16.msra.mxu0 0
        %598 = vmatprep.subr.bf16.mxu0 0
        %599 = vmatpush2.bf16.msra.mxu0 0
        %600 = vmatprep.subr.bf16.mxu0 0
        %601 = vmatpush2.bf16.msra.mxu0 0
        %602 = vmatprep.mubr.bf16.mxu0 0
        %603 = vmatmul.mubr.bf16.gmra.mxu0 %v564
        %v604 = vpop.f32.mrf.mxu0
        %v605 = vadd.f32 0.0, %v604
        %v606 = vpop.f32.mrf.mxu0
        %v607 = vpop.f32.mrf.mxu0
        %v608 = vadd.f32 0.0, %v607
        %v609 = vpop.f32.mrf.mxu0
        %610 = vdwg.mxu0
        %v613 = vunpack.c.l.b16 %v541
        %v614 = vunpack.c.l.b16 %v542
        %v615 = vpack.c.b16 %v614, %v613
        %v617 = vsel %vm562, %v615, 0
        %v620 = vsel %vm566, %v538, 0
        %622 = vmatprep.subr.bf16.mxu0 0
        %623 = vmatpush1.bf16.msra.mxu0 0
        %624 = vmatprep.subr.bf16.mxu0 0
        %625 = vmatpush1.bf16.msra.mxu0 0
        %626 = vmatprep.subr.bf16.mxu0 0
        %627 = vmatpush1.bf16.msra.mxu0 0
        %628 = vmatprep.subr.bf16.mxu0 0
        %629 = vmatpush1.bf16.msra.mxu0 0
        %630 = vmatprep.subr.bf16.mxu0 0
        %631 = vmatpush1.bf16.msra.mxu0 0
        %632 = vmatprep.subr.bf16.mxu0 0
        %633 = vmatpush1.bf16.msra.mxu0 0
        %634 = vmatprep.subr.bf16.mxu0 0
        %635 = vmatpush1.bf16.msra.mxu0 0
        %636 = vmatprep.subr.bf16.mxu0 0
        %637 = vmatpush1.bf16.msra.mxu0 %v620
        %638 = vmatprep.subr.bf16.mxu0 0
        %639 = vmatpush2.bf16.msra.mxu0 0
        %640 = vmatprep.subr.bf16.mxu0 0
        %641 = vmatpush2.bf16.msra.mxu0 0
        %642 = vmatprep.subr.bf16.mxu0 0
        %643 = vmatpush2.bf16.msra.mxu0 0
        %644 = vmatprep.subr.bf16.mxu0 0
        %645 = vmatpush2.bf16.msra.mxu0 0
        %646 = vmatprep.subr.bf16.mxu0 0
        %647 = vmatpush2.bf16.msra.mxu0 0
        %648 = vmatprep.subr.bf16.mxu0 0
        %649 = vmatpush2.bf16.msra.mxu0 0
        %650 = vmatprep.subr.bf16.mxu0 0
        %651 = vmatpush2.bf16.msra.mxu0 0
        %652 = vmatprep.subr.bf16.mxu0 0
        %653 = vmatpush2.bf16.msra.mxu0 0
        %654 = vmatprep.mubr.bf16.mxu0 0
        %655 = vmatmul.mubr.bf16.gmra.mxu0 %v617
        %v656 = vpop.f32.mrf.mxu0
        %v657 = vadd.f32 %v605, %v656
        %v658 = vpop.f32.mrf.mxu0
        %v659 = vpop.f32.mrf.mxu0
        %v660 = vadd.f32 %v608, %v659
        %v661 = vpop.f32.mrf.mxu0
        %662 = vdwg.mxu0
        %v663 = vld [vmem:[%s2] sm:$0xff]
        %v664 = vld [vmem:[%s2 + $0x8] sm:$0xff]
        %666 = vset.pattern.permute.xlu0 0
        %667 = vperm.xlu0 %666, %v663
        %v668 = vpop.permute.xlu0 %667
        %671 = vset.pattern.permute.xlu0 0
        %672 = vperm.xlu0 %671, %v664
        %v673 = vpop.permute.xlu0 %672
        %v675 = vadd.f32 %v657, %v668
        %v676 = vadd.f32 %v660, %v673
        %v677 = vmax.f32 %v675, 0.0
        %v678 = vmax.f32 %v676, 0.0
        %v679 = vpack.c.bf16 %v678, %v677
        %680 = vst [vmem:[#allocation3 + $0x8] sm:$0xff] %v677
        %681 = vst [vmem:[#allocation3 + $0x18] sm:$0xff] %v678
        %s682 = scalar_lea.vmem %s3, 8
        %v683 = vld [vmem:[%s682] sm:$0xf]
        %v684 = vld [vmem:[%s682 + $0x4] sm:$0xf]
        %v685 = vld [vmem:[#allocation3] sm:$0xff]
        %v686 = vld [vmem:[#allocation3 + $0x8] sm:$0xff]
        %v687 = vld [vmem:[#allocation3 + $0x10] sm:$0xff]
        %v688 = vld [vmem:[#allocation3 + $0x18] sm:$0xff]
        %v689 = vpack.c.bf16 %v687, %v685
        %v690 = vpack.c.bf16 %v688, %v686
        %v691 = vld [vmem:[%s3] sm:$0xf]
        %v692 = vld [vmem:[%s3 + $0x4] sm:$0xf]
        %v695 = vunpack.c.l.b16 %v691
        %v696 = vunpack.c.l.b16 %v692
        %v697 = vpack.c.b16 %v696, %v695
        %700 = vrot.lane.b32.xlu0 %v689, 1
        %v701 = vpop.permute.xlu0 %700
        %702 = vrot.lane.b32.xlu0 %v690, 1
        %v703 = vpop.permute.xlu0 %702
        %v704 = vsel %vm560, %v701, %v703
        %vm706 = vcmask 130048
        %v708 = vsel %vm706, %v697, 0
        %710 = vmatprep.subr.bf16.mxu0 0
        %711 = vmatpush1.bf16.msra.mxu0 0
        %712 = vmatprep.subr.bf16.mxu0 0
        %713 = vmatpush1.bf16.msra.mxu0 0
        %714 = vmatprep.subr.bf16.mxu0 0
        %715 = vmatpush1.bf16.msra.mxu0 0
        %716 = vmatprep.subr.bf16.mxu0 0
        %717 = vmatpush1.bf16.msra.mxu0 0
        %718 = vmatprep.subr.bf16.mxu0 0
        %719 = vmatpush1.bf16.msra.mxu0 0
        %720 = vmatprep.subr.bf16.mxu0 0
        %721 = vmatpush1.bf16.msra.mxu0 0
        %722 = vmatprep.subr.bf16.mxu0 0
        %723 = vmatpush1.bf16.msra.mxu0 0
        %724 = vmatprep.subr.bf16.mxu0 0
        %725 = vmatpush1.bf16.msra.mxu0 %v704
        %726 = vmatprep.subr.bf16.mxu0 0
        %727 = vmatpush2.bf16.msra.mxu0 0
        %728 = vmatprep.subr.bf16.mxu0 0
        %729 = vmatpush2.bf16.msra.mxu0 0
        %730 = vmatprep.subr.bf16.mxu0 0
        %731 = vmatpush2.bf16.msra.mxu0 0
        %732 = vmatprep.subr.bf16.mxu0 0
        %733 = vmatpush2.bf16.msra.mxu0 0
        %734 = vmatprep.subr.bf16.mxu0 0
        %735 = vmatpush2.bf16.msra.mxu0 0
        %736 = vmatprep.subr.bf16.mxu0 0
        %737 = vmatpush2.bf16.msra.mxu0 0
        %738 = vmatprep.subr.bf16.mxu0 0
        %739 = vmatpush2.bf16.msra.mxu0 0
        %740 = vmatprep.subr.bf16.mxu0 0
        %741 = vmatpush2.bf16.msra.mxu0 0
        %742 = vmatprep.mubr.bf16.mxu0 0
        %743 = vmatmul.mubr.bf16.gmra.mxu0 %v708
        %v744 = vpop.f32.mrf.mxu0
        %v745 = vadd.f32 0.0, %v744
        %v746 = vpop.f32.mrf.mxu0
        %v747 = vpop.f32.mrf.mxu0
        %v748 = vadd.f32 0.0, %v747
        %v749 = vpop.f32.mrf.mxu0
        %750 = vdwg.mxu0
        %v753 = vunpack.c.l.b16 %v683
        %v754 = vunpack.c.l.b16 %v684
        %v755 = vpack.c.b16 %v754, %v753
        %v757 = vsel %vm706, %v755, 0
        %759 = vmatprep.subr.bf16.mxu0 0
        %760 = vmatpush1.bf16.msra.mxu0 0
        %761 = vmatprep.subr.bf16.mxu0 0
        %762 = vmatpush1.bf16.msra.mxu0 0
        %763 = vmatprep.subr.bf16.mxu0 0
        %764 = vmatpush1.bf16.msra.mxu0 0
        %765 = vmatprep.subr.bf16.mxu0 0
        %766 = vmatpush1.bf16.msra.mxu0 0
        %767 = vmatprep.subr.bf16.mxu0 0
        %768 = vmatpush1.bf16.msra.mxu0 0
        %769 = vmatprep.subr.bf16.mxu0 0
        %770 = vmatpush1.bf16.msra.mxu0 0
        %771 = vmatprep.subr.bf16.mxu0 0
        %772 = vmatpush1.bf16.msra.mxu0 0
        %773 = vmatprep.subr.bf16.mxu0 0
        %774 = vmatpush1.bf16.msra.mxu0 %v679
        %775 = vmatprep.subr.bf16.mxu0 0
        %776 = vmatpush2.bf16.msra.mxu0 0
        %777 = vmatprep.subr.bf16.mxu0 0
        %778 = vmatpush2.bf16.msra.mxu0 0
        %779 = vmatprep.subr.bf16.mxu0 0
        %780 = vmatpush2.bf16.msra.mxu0 0
        %781 = vmatprep.subr.bf16.mxu0 0
        %782 = vmatpush2.bf16.msra.mxu0 0
        %783 = vmatprep.subr.bf16.mxu0 0
        %784 = vmatpush2.bf16.msra.mxu0 0
        %785 = vmatprep.subr.bf16.mxu0 0
        %786 = vmatpush2.bf16.msra.mxu0 0
        %787 = vmatprep.subr.bf16.mxu0 0
        %788 = vmatpush2.bf16.msra.mxu0 0
        %789 = vmatprep.subr.bf16.mxu0 0
        %790 = vmatpush2.bf16.msra.mxu0 0
        %791 = vmatprep.mubr.bf16.mxu0 0
        %792 = vmatmul.mubr.bf16.gmra.mxu0 %v757
        %v793 = vpop.f32.mrf.mxu0
        %v794 = vadd.f32 %v745, %v793
        %v795 = vpop.f32.mrf.mxu0
        %v796 = vpop.f32.mrf.mxu0
        %v797 = vadd.f32 %v748, %v796
        %v798 = vpop.f32.mrf.mxu0
        %799 = vdwg.mxu0
        %v800 = vld [vmem:[%s4] sm:$0xff]
        %v801 = vld [vmem:[%s4 + $0x8] sm:$0xff]
        %803 = vset.pattern.permute.xlu0 0
        %804 = vperm.xlu0 %803, %v800
        %v805 = vpop.permute.xlu0 %804
        %808 = vset.pattern.permute.xlu0 0
        %809 = vperm.xlu0 %808, %v801
        %v810 = vpop.permute.xlu0 %809
        %v812 = vadd.f32 %v794, %v805
        %v813 = vadd.f32 %v797, %v810
        %v814 = vmax.f32 %v812, 0.0
        %v815 = vmax.f32 %v813, 0.0
        %v816 = vld [vmem:[%s5] sm:$0xf]
        %v817 = vld [vmem:[%s5 + $0x4] sm:$0xf]
        %v818 = vld [vmem:[%s6] sm:$0xff]
        %v819 = vld [vmem:[%s6 + $0x8] sm:$0xff]
        %821 = vset.pattern.permute.xlu0 0
        %822 = vperm.xlu0 %821, %v818
        %v823 = vpop.permute.xlu0 %822
        %826 = vset.pattern.permute.xlu0 0
        %827 = vperm.xlu0 %826, %v819
        %v828 = vpop.permute.xlu0 %827
        %v832 = vunpack.c.l.b16 %v816
        %v833 = vunpack.c.l.b16 %v817
        %v834 = vpack.c.b16 %v833, %v832
        %v836 = vsel %vm562, %v834, 0
        %838 = vmatprep.subr.bf16.mxu0 0
        %839 = vmatpush1.bf16.msra.mxu0 0
        %840 = vmatprep.subr.bf16.mxu0 0
        %841 = vmatpush1.bf16.msra.mxu0 0
        %842 = vmatprep.subr.bf16.mxu0 0
        %843 = vmatpush1.bf16.msra.mxu0 0
        %844 = vmatprep.subr.bf16.mxu0 0
        %845 = vmatpush1.bf16.msra.mxu0 0
        %846 = vmatprep.subr.bf16.mxu0 0
        %847 = vmatpush1.bf16.msra.mxu0 0
        %848 = vmatprep.subr.bf16.mxu0 0
        %849 = vmatpush1.bf16.msra.mxu0 0
        %850 = vmatprep.subr.bf16.mxu0 0
        %851 = vmatpush1.bf16.msra.mxu0 0
        %852 = vmatprep.subr.bf16.mxu0 0
        %853 = vmatpush1.bf16.msra.mxu0 %v620
        %854 = vmatprep.subr.bf16.mxu0 0
        %855 = vmatpush2.bf16.msra.mxu0 0
        %856 = vmatprep.subr.bf16.mxu0 0
        %857 = vmatpush2.bf16.msra.mxu0 0
        %858 = vmatprep.subr.bf16.mxu0 0
        %859 = vmatpush2.bf16.msra.mxu0 0
        %860 = vmatprep.subr.bf16.mxu0 0
        %861 = vmatpush2.bf16.msra.mxu0 0
        %862 = vmatprep.subr.bf16.mxu0 0
        %863 = vmatpush2.bf16.msra.mxu0 0
        %864 = vmatprep.subr.bf16.mxu0 0
        %865 = vmatpush2.bf16.msra.mxu0 0
        %866 = vmatprep.subr.bf16.mxu0 0
        %867 = vmatpush2.bf16.msra.mxu0 0
        %868 = vmatprep.subr.bf16.mxu0 0
        %869 = vmatpush2.bf16.msra.mxu0 0
        %870 = vmatprep.mubr.bf16.mxu0 0
        %871 = vmatmul.mubr.bf16.gmra.mxu0 %v836
        %v872 = vpop.f32.mrf.mxu0
        %v873 = vadd.f32 %v823, %v872
        %v874 = vpop.f32.mrf.mxu0
        %v875 = vpop.f32.mrf.mxu0
        %v876 = vadd.f32 %v828, %v875
        %v877 = vpop.f32.mrf.mxu0
        %878 = vdwg.mxu0
        %v879 = vadd.f32 %v814, %v873
        %v880 = vadd.f32 %v815, %v876
        %v881 = vmax.f32 %v879, 0.0
        %v882 = vmax.f32 %v880, 0.0
        %vm883 = vcmask 1048568
        %884 = vst.msk [vmem:[#allocation2] sm:$0xff] %vm883, %v537
        %885 = vst.msk [vmem:[#allocation3] sm:$0xff] %vm883, %v677
        %886 = vst.msk [vmem:[#allocation3 + $0x10] sm:$0xff] %vm883, %v678
        %v887 = vpack.c.bf16 %v882, %v881
        %888 = vst [vmem:[#allocation4 + $0x8] sm:$0xff] %v881
        %889 = vst [vmem:[#allocation4 + $0x18] sm:$0xff] %v882
        %s890 = scalar_lea.vmem %s7, 8
        %v891 = vld [vmem:[%s890] sm:$0xf]
        %v892 = vld [vmem:[%s890 + $0x4] sm:$0xf]
        %v893 = vld [vmem:[#allocation4] sm:$0xff]
        %v894 = vld [vmem:[#allocation4 + $0x8] sm:$0xff]
        %v895 = vld [vmem:[#allocation4 + $0x10] sm:$0xff]
        %v896 = vld [vmem:[#allocation4 + $0x18] sm:$0xff]
        %v897 = vpack.c.bf16 %v895, %v893
        %v898 = vpack.c.bf16 %v896, %v894
        %v899 = vld [vmem:[%s7] sm:$0xf]
        %v900 = vld [vmem:[%s7 + $0x4] sm:$0xf]
        %v903 = vunpack.c.l.b16 %v899
        %v904 = vunpack.c.l.b16 %v900
        %v905 = vpack.c.b16 %v904, %v903
        %908 = vrot.lane.b32.xlu0 %v897, 2
        %v909 = vpop.permute.xlu0 %908
        %910 = vrot.lane.b32.xlu0 %v898, 2
        %v911 = vpop.permute.xlu0 %910
        %vm912 = vcmask 15360
        %v913 = vsel %vm912, %v909, %v911
        %v916 = vsel %vm706, %v905, 0
        %918 = vmatprep.subr.bf16.mxu0 0
        %919 = vmatpush1.bf16.msra.mxu0 0
        %920 = vmatprep.subr.bf16.mxu0 0
        %921 = vmatpush1.bf16.msra.mxu0 0
        %922 = vmatprep.subr.bf16.mxu0 0
        %923 = vmatpush1.bf16.msra.mxu0 0
        %924 = vmatprep.subr.bf16.mxu0 0
        %925 = vmatpush1.bf16.msra.mxu0 0
        %926 = vmatprep.subr.bf16.mxu0 0
        %927 = vmatpush1.bf16.msra.mxu0 0
        %928 = vmatprep.subr.bf16.mxu0 0
        %929 = vmatpush1.bf16.msra.mxu0 0
        %930 = vmatprep.subr.bf16.mxu0 0
        %931 = vmatpush1.bf16.msra.mxu0 0
        %932 = vmatprep.subr.bf16.mxu0 0
        %933 = vmatpush1.bf16.msra.mxu0 %v913
        %934 = vmatprep.subr.bf16.mxu0 0
        %935 = vmatpush2.bf16.msra.mxu0 0
        %936 = vmatprep.subr.bf16.mxu0 0
        %937 = vmatpush2.bf16.msra.mxu0 0
        %938 = vmatprep.subr.bf16.mxu0 0
        %939 = vmatpush2.bf16.msra.mxu0 0
        %940 = vmatprep.subr.bf16.mxu0 0
        %941 = vmatpush2.bf16.msra.mxu0 0
        %942 = vmatprep.subr.bf16.mxu0 0
        %943 = vmatpush2.bf16.msra.mxu0 0
        %944 = vmatprep.subr.bf16.mxu0 0
        %945 = vmatpush2.bf16.msra.mxu0 0
        %946 = vmatprep.subr.bf16.mxu0 0
        %947 = vmatpush2.bf16.msra.mxu0 0
        %948 = vmatprep.subr.bf16.mxu0 0
        %949 = vmatpush2.bf16.msra.mxu0 0
        %950 = vmatprep.mubr.bf16.mxu0 0
        %951 = vmatmul.mubr.bf16.gmra.mxu0 %v916
        %v952 = vpop.f32.mrf.mxu0
        %v953 = vadd.f32 0.0, %v952
        %v954 = vpop.f32.mrf.mxu0
        %v955 = vpop.f32.mrf.mxu0
        %v956 = vadd.f32 0.0, %v955
        %v957 = vpop.f32.mrf.mxu0
        %958 = vdwg.mxu0
        %v961 = vunpack.c.l.b16 %v891
        %v962 = vunpack.c.l.b16 %v892
        %v963 = vpack.c.b16 %v962, %v961
        %v965 = vsel %vm706, %v963, 0
        %967 = vmatprep.subr.bf16.mxu0 0
        %968 = vmatpush1.bf16.msra.mxu0 0
        %969 = vmatprep.subr.bf16.mxu0 0
        %970 = vmatpush1.bf16.msra.mxu0 0
        %971 = vmatprep.subr.bf16.mxu0 0
        %972 = vmatpush1.bf16.msra.mxu0 0
        %973 = vmatprep.subr.bf16.mxu0 0
        %974 = vmatpush1.bf16.msra.mxu0 0
        %975 = vmatprep.subr.bf16.mxu0 0
        %976 = vmatpush1.bf16.msra.mxu0 0
        %977 = vmatprep.subr.bf16.mxu0 0
        %978 = vmatpush1.bf16.msra.mxu0 0
        %979 = vmatprep.subr.bf16.mxu0 0
        %980 = vmatpush1.bf16.msra.mxu0 0
        %981 = vmatprep.subr.bf16.mxu0 0
        %982 = vmatpush1.bf16.msra.mxu0 %v887
        %983 = vmatprep.subr.bf16.mxu0 0
        %984 = vmatpush2.bf16.msra.mxu0 0
        %985 = vmatprep.subr.bf16.mxu0 0
        %986 = vmatpush2.bf16.msra.mxu0 0
        %987 = vmatprep.subr.bf16.mxu0 0
        %988 = vmatpush2.bf16.msra.mxu0 0
        %989 = vmatprep.subr.bf16.mxu0 0
        %990 = vmatpush2.bf16.msra.mxu0 0
        %991 = vmatprep.subr.bf16.mxu0 0
        %992 = vmatpush2.bf16.msra.mxu0 0
        %993 = vmatprep.subr.bf16.mxu0 0
        %994 = vmatpush2.bf16.msra.mxu0 0
        %995 = vmatprep.subr.bf16.mxu0 0
        %996 = vmatpush2.bf16.msra.mxu0 0
        %997 = vmatprep.subr.bf16.mxu0 0
        %998 = vmatpush2.bf16.msra.mxu0 0
        %999 = vmatprep.mubr.bf16.mxu0 0
        %1000 = vmatmul.mubr.bf16.gmra.mxu0 %v965
        %v1001 = vpop.f32.mrf.mxu0
        %v1002 = vadd.f32 %v953, %v1001
        %v1003 = vpop.f32.mrf.mxu0
        %v1004 = vpop.f32.mrf.mxu0
        %v1005 = vadd.f32 %v956, %v1004
        %v1006 = vpop.f32.mrf.mxu0
        %1007 = vdwg.mxu0
        %v1008 = vld [vmem:[%s8] sm:$0xff]
        %v1009 = vld [vmem:[%s8 + $0x8] sm:$0xff]
        %1011 = vset.pattern.permute.xlu0 0
        %1012 = vperm.xlu0 %1011, %v1008
        %v1013 = vpop.permute.xlu0 %1012
        %1016 = vset.pattern.permute.xlu0 0
        %1017 = vperm.xlu0 %1016, %v1009
        %v1018 = vpop.permute.xlu0 %1017
        %v1020 = vadd.f32 %v1002, %v1013
        %v1021 = vadd.f32 %v1005, %v1018
        %v1022 = vmax.f32 %v1020, 0.0
        %v1023 = vmax.f32 %v1021, 0.0
        %v1024 = vpack.c.bf16 %v1023, %v1022
        %1025 = vst [vmem:[#allocation5 + $0x8] sm:$0xff] %v1022
        %1026 = vst [vmem:[#allocation5 + $0x18] sm:$0xff] %v1023
        %s1027 = scalar_lea.vmem %s9, 8
        %v1028 = vld [vmem:[%s1027] sm:$0xf]
        %v1029 = vld [vmem:[%s1027 + $0x4] sm:$0xf]
        %v1030 = vld [vmem:[#allocation5] sm:$0xff]
        %v1031 = vld [vmem:[#allocation5 + $0x8] sm:$0xff]
        %v1032 = vld [vmem:[#allocation5 + $0x10] sm:$0xff]
        %v1033 = vld [vmem:[#allocation5 + $0x18] sm:$0xff]
        %v1034 = vpack.c.bf16 %v1032, %v1030
        %v1035 = vpack.c.bf16 %v1033, %v1031
        %v1036 = vld [vmem:[%s9] sm:$0xf]
        %v1037 = vld [vmem:[%s9 + $0x4] sm:$0xf]
        %v1040 = vunpack.c.l.b16 %v1036
        %v1041 = vunpack.c.l.b16 %v1037
        %v1042 = vpack.c.b16 %v1041, %v1040
        %1045 = vrot.lane.b32.xlu0 %v1034, 2
        %v1046 = vpop.permute.xlu0 %1045
        %1047 = vrot.lane.b32.xlu0 %v1035, 2
        %v1048 = vpop.permute.xlu0 %1047
        %v1049 = vsel %vm912, %v1046, %v1048
        %v1052 = vsel %vm706, %v1042, 0
        %1054 = vmatprep.subr.bf16.mxu0 0
        %1055 = vmatpush1.bf16.msra.mxu0 0
        %1056 = vmatprep.subr.bf16.mxu0 0
        %1057 = vmatpush1.bf16.msra.mxu0 0
        %1058 = vmatprep.subr.bf16.mxu0 0
        %1059 = vmatpush1.bf16.msra.mxu0 0
        %1060 = vmatprep.subr.bf16.mxu0 0
        %1061 = vmatpush1.bf16.msra.mxu0 0
        %1062 = vmatprep.subr.bf16.mxu0 0
        %1063 = vmatpush1.bf16.msra.mxu0 0
        %1064 = vmatprep.subr.bf16.mxu0 0
        %1065 = vmatpush1.bf16.msra.mxu0 0
        %1066 = vmatprep.subr.bf16.mxu0 0
        %1067 = vmatpush1.bf16.msra.mxu0 0
        %1068 = vmatprep.subr.bf16.mxu0 0
        %1069 = vmatpush1.bf16.msra.mxu0 %v1049
        %1070 = vmatprep.subr.bf16.mxu0 0
        %1071 = vmatpush2.bf16.msra.mxu0 0
        %1072 = vmatprep.subr.bf16.mxu0 0
        %1073 = vmatpush2.bf16.msra.mxu0 0
        %1074 = vmatprep.subr.bf16.mxu0 0
        %1075 = vmatpush2.bf16.msra.mxu0 0
        %1076 = vmatprep.subr.bf16.mxu0 0
        %1077 = vmatpush2.bf16.msra.mxu0 0
        %1078 = vmatprep.subr.bf16.mxu0 0
        %1079 = vmatpush2.bf16.msra.mxu0 0
        %1080 = vmatprep.subr.bf16.mxu0 0
        %1081 = vmatpush2.bf16.msra.mxu0 0
        %1082 = vmatprep.subr.bf16.mxu0 0
        %1083 = vmatpush2.bf16.msra.mxu0 0
        %1084 = vmatprep.subr.bf16.mxu0 0
        %1085 = vmatpush2.bf16.msra.mxu0 0
        %1086 = vmatprep.mubr.bf16.mxu0 0
        %1087 = vmatmul.mubr.bf16.gmra.mxu0 %v1052
        %v1088 = vpop.f32.mrf.mxu0
        %v1089 = vadd.f32 0.0, %v1088
        %v1090 = vpop.f32.mrf.mxu0
        %v1091 = vpop.f32.mrf.mxu0
        %v1092 = vadd.f32 0.0, %v1091
        %v1093 = vpop.f32.mrf.mxu0
        %1094 = vdwg.mxu0
        %v1097 = vunpack.c.l.b16 %v1028
        %v1098 = vunpack.c.l.b16 %v1029
        %v1099 = vpack.c.b16 %v1098, %v1097
        %v1101 = vsel %vm706, %v1099, 0
        %1103 = vmatprep.subr.bf16.mxu0 0
        %1104 = vmatpush1.bf16.msra.mxu0 0
        %1105 = vmatprep.subr.bf16.mxu0 0
        %1106 = vmatpush1.bf16.msra.mxu0 0
        %1107 = vmatprep.subr.bf16.mxu0 0
        %1108 = vmatpush1.bf16.msra.mxu0 0
        %1109 = vmatprep.subr.bf16.mxu0 0
        %1110 = vmatpush1.bf16.msra.mxu0 0
        %1111 = vmatprep.subr.bf16.mxu0 0
        %1112 = vmatpush1.bf16.msra.mxu0 0
        %1113 = vmatprep.subr.bf16.mxu0 0
        %1114 = vmatpush1.bf16.msra.mxu0 0
        %1115 = vmatprep.subr.bf16.mxu0 0
        %1116 = vmatpush1.bf16.msra.mxu0 0
        %1117 = vmatprep.subr.bf16.mxu0 0
        %1118 = vmatpush1.bf16.msra.mxu0 %v1024
        %1119 = vmatprep.subr.bf16.mxu0 0
        %1120 = vmatpush2.bf16.msra.mxu0 0
        %1121 = vmatprep.subr.bf16.mxu0 0
        %1122 = vmatpush2.bf16.msra.mxu0 0
        %1123 = vmatprep.subr.bf16.mxu0 0
        %1124 = vmatpush2.bf16.msra.mxu0 0
        %1125 = vmatprep.subr.bf16.mxu0 0
        %1126 = vmatpush2.bf16.msra.mxu0 0
        %1127 = vmatprep.subr.bf16.mxu0 0
        %1128 = vmatpush2.bf16.msra.mxu0 0
        %1129 = vmatprep.subr.bf16.mxu0 0
        %1130 = vmatpush2.bf16.msra.mxu0 0
        %1131 = vmatprep.subr.bf16.mxu0 0
        %1132 = vmatpush2.bf16.msra.mxu0 0
        %1133 = vmatprep.subr.bf16.mxu0 0
        %1134 = vmatpush2.bf16.msra.mxu0 0
        %1135 = vmatprep.mubr.bf16.mxu0 0
        %1136 = vmatmul.mubr.bf16.gmra.mxu0 %v1101
        %v1137 = vpop.f32.mrf.mxu0
        %v1138 = vadd.f32 %v1089, %v1137
        %v1139 = vpop.f32.mrf.mxu0
        %v1140 = vpop.f32.mrf.mxu0
        %v1141 = vadd.f32 %v1092, %v1140
        %v1142 = vpop.f32.mrf.mxu0
        %1143 = vdwg.mxu0
        %v1144 = vld [vmem:[%s10] sm:$0xff]
        %v1145 = vld [vmem:[%s10 + $0x8] sm:$0xff]
        %1147 = vset.pattern.permute.xlu0 0
        %1148 = vperm.xlu0 %1147, %v1144
        %v1149 = vpop.permute.xlu0 %1148
        %1152 = vset.pattern.permute.xlu0 0
        %1153 = vperm.xlu0 %1152, %v1145
        %v1154 = vpop.permute.xlu0 %1153
        %v1156 = vadd.f32 %v1138, %v1149
        %v1157 = vadd.f32 %v1141, %v1154
        %v1158 = vmax.f32 %v1156, 0.0
        %v1159 = vmax.f32 %v1157, 0.0
        %v1160 = vadd.f32 %v1158, %v881
        %v1161 = vadd.f32 %v1159, %v882
        %v1162 = vmax.f32 %v1160, 0.0
        %v1163 = vmax.f32 %v1161, 0.0
        %vm1164 = vcmask 1048560
        %1165 = vst.msk [vmem:[#allocation4] sm:$0xff] %vm1164, %v881
        %1166 = vst.msk [vmem:[#allocation4 + $0x10] sm:$0xff] %vm1164, %v882
        %1167 = vst.msk [vmem:[#allocation5] sm:$0xff] %vm1164, %v1022
        %1168 = vst.msk [vmem:[#allocation5 + $0x10] sm:$0xff] %vm1164, %v1023
        %v1169 = vpack.c.bf16 %v1163, %v1162
        %1170 = vst [vmem:[#allocation6 + $0x8] sm:$0xff] %v1162
        %1171 = vst [vmem:[#allocation6 + $0x18] sm:$0xff] %v1163
        %s1172 = scalar_lea.vmem %s11, 8
        %v1173 = vld [vmem:[%s1172] sm:$0xf]
        %v1174 = vld [vmem:[%s1172 + $0x4] sm:$0xf]
        %v1175 = vld [vmem:[#allocation6] sm:$0xff]
        %v1176 = vld [vmem:[#allocation6 + $0x8] sm:$0xff]
        %v1177 = vld [vmem:[#allocation6 + $0x10] sm:$0xff]
        %v1178 = vld [vmem:[#allocation6 + $0x18] sm:$0xff]
        %v1179 = vpack.c.bf16 %v1177, %v1175
        %v1180 = vpack.c.bf16 %v1178, %v1176
        %v1181 = vld [vmem:[%s11] sm:$0xf]
        %v1182 = vld [vmem:[%s11 + $0x4] sm:$0xf]
        %v1185 = vunpack.c.l.b16 %v1181
        %v1186 = vunpack.c.l.b16 %v1182
        %v1187 = vpack.c.b16 %v1186, %v1185
        %1190 = vrot.lane.b32.xlu0 %v1179, 4
        %v1191 = vpop.permute.xlu0 %1190
        %1192 = vrot.lane.b32.xlu0 %v1180, 4
        %v1193 = vpop.permute.xlu0 %1192
        %vm1194 = vcmask 31744
        %v1195 = vsel %vm1194, %v1191, %v1193
        %v1198 = vsel %vm706, %v1187, 0
        %1200 = vmatprep.subr.bf16.mxu0 0
        %1201 = vmatpush1.bf16.msra.mxu0 0
        %1202 = vmatprep.subr.bf16.mxu0 0
        %1203 = vmatpush1.bf16.msra.mxu0 0
        %1204 = vmatprep.subr.bf16.mxu0 0
        %1205 = vmatpush1.bf16.msra.mxu0 0
        %1206 = vmatprep.subr.bf16.mxu0 0
        %1207 = vmatpush1.bf16.msra.mxu0 0
        %1208 = vmatprep.subr.bf16.mxu0 0
        %1209 = vmatpush1.bf16.msra.mxu0 0
        %1210 = vmatprep.subr.bf16.mxu0 0
        %1211 = vmatpush1.bf16.msra.mxu0 0
        %1212 = vmatprep.subr.bf16.mxu0 0
        %1213 = vmatpush1.bf16.msra.mxu0 0
        %1214 = vmatprep.subr.bf16.mxu0 0
        %1215 = vmatpush1.bf16.msra.mxu0 %v1195
        %1216 = vmatprep.subr.bf16.mxu0 0
        %1217 = vmatpush2.bf16.msra.mxu0 0
        %1218 = vmatprep.subr.bf16.mxu0 0
        %1219 = vmatpush2.bf16.msra.mxu0 0
        %1220 = vmatprep.subr.bf16.mxu0 0
        %1221 = vmatpush2.bf16.msra.mxu0 0
        %1222 = vmatprep.subr.bf16.mxu0 0
        %1223 = vmatpush2.bf16.msra.mxu0 0
        %1224 = vmatprep.subr.bf16.mxu0 0
        %1225 = vmatpush2.bf16.msra.mxu0 0
        %1226 = vmatprep.subr.bf16.mxu0 0
        %1227 = vmatpush2.bf16.msra.mxu0 0
        %1228 = vmatprep.subr.bf16.mxu0 0
        %1229 = vmatpush2.bf16.msra.mxu0 0
        %1230 = vmatprep.subr.bf16.mxu0 0
        %1231 = vmatpush2.bf16.msra.mxu0 0
        %1232 = vmatprep.mubr.bf16.mxu0 0
        %1233 = vmatmul.mubr.bf16.gmra.mxu0 %v1198
        %v1234 = vpop.f32.mrf.mxu0
        %v1235 = vadd.f32 0.0, %v1234
        %v1236 = vpop.f32.mrf.mxu0
        %v1237 = vpop.f32.mrf.mxu0
        %v1238 = vadd.f32 0.0, %v1237
        %v1239 = vpop.f32.mrf.mxu0
        %1240 = vdwg.mxu0
        %v1243 = vunpack.c.l.b16 %v1173
        %v1244 = vunpack.c.l.b16 %v1174
        %v1245 = vpack.c.b16 %v1244, %v1243
        %v1247 = vsel %vm706, %v1245, 0
        %1249 = vmatprep.subr.bf16.mxu0 0
        %1250 = vmatpush1.bf16.msra.mxu0 0
        %1251 = vmatprep.subr.bf16.mxu0 0
        %1252 = vmatpush1.bf16.msra.mxu0 0
        %1253 = vmatprep.subr.bf16.mxu0 0
        %1254 = vmatpush1.bf16.msra.mxu0 0
        %1255 = vmatprep.subr.bf16.mxu0 0
        %1256 = vmatpush1.bf16.msra.mxu0 0
        %1257 = vmatprep.subr.bf16.mxu0 0
        %1258 = vmatpush1.bf16.msra.mxu0 0
        %1259 = vmatprep.subr.bf16.mxu0 0
        %1260 = vmatpush1.bf16.msra.mxu0 0
        %1261 = vmatprep.subr.bf16.mxu0 0
        %1262 = vmatpush1.bf16.msra.mxu0 0
        %1263 = vmatprep.subr.bf16.mxu0 0
        %1264 = vmatpush1.bf16.msra.mxu0 %v1169
        %1265 = vmatprep.subr.bf16.mxu0 0
        %1266 = vmatpush2.bf16.msra.mxu0 0
        %1267 = vmatprep.subr.bf16.mxu0 0
        %1268 = vmatpush2.bf16.msra.mxu0 0
        %1269 = vmatprep.subr.bf16.mxu0 0
        %1270 = vmatpush2.bf16.msra.mxu0 0
        %1271 = vmatprep.subr.bf16.mxu0 0
        %1272 = vmatpush2.bf16.msra.mxu0 0
        %1273 = vmatprep.subr.bf16.mxu0 0
        %1274 = vmatpush2.bf16.msra.mxu0 0
        %1275 = vmatprep.subr.bf16.mxu0 0
        %1276 = vmatpush2.bf16.msra.mxu0 0
        %1277 = vmatprep.subr.bf16.mxu0 0
        %1278 = vmatpush2.bf16.msra.mxu0 0
        %1279 = vmatprep.subr.bf16.mxu0 0
        %1280 = vmatpush2.bf16.msra.mxu0 0
        %1281 = vmatprep.mubr.bf16.mxu0 0
        %1282 = vmatmul.mubr.bf16.gmra.mxu0 %v1247
        %v1283 = vpop.f32.mrf.mxu0
        %v1284 = vadd.f32 %v1235, %v1283
        %v1285 = vpop.f32.mrf.mxu0
        %v1286 = vpop.f32.mrf.mxu0
        %v1287 = vadd.f32 %v1238, %v1286
        %v1288 = vpop.f32.mrf.mxu0
        %1289 = vdwg.mxu0
        %v1290 = vld [vmem:[%s12] sm:$0xff]
        %v1291 = vld [vmem:[%s12 + $0x8] sm:$0xff]
        %1293 = vset.pattern.permute.xlu0 0
        %1294 = vperm.xlu0 %1293, %v1290
        %v1295 = vpop.permute.xlu0 %1294
        %1298 = vset.pattern.permute.xlu0 0
        %1299 = vperm.xlu0 %1298, %v1291
        %v1300 = vpop.permute.xlu0 %1299
        %v1302 = vadd.f32 %v1284, %v1295
        %v1303 = vadd.f32 %v1287, %v1300
        %v1304 = vmax.f32 %v1302, 0.0
        %v1305 = vmax.f32 %v1303, 0.0
        %v1306 = vpack.c.bf16 %v1305, %v1304
        %1307 = vst [vmem:[#allocation7 + $0x8] sm:$0xff] %v1304
        %1308 = vst [vmem:[#allocation7 + $0x18] sm:$0xff] %v1305
        %s1309 = scalar_lea.vmem %s13, 8
        %v1310 = vld [vmem:[%s1309] sm:$0xf]
        %v1311 = vld [vmem:[%s1309 + $0x4] sm:$0xf]
        %v1312 = vld [vmem:[#allocation7] sm:$0xff]
        %v1313 = vld [vmem:[#allocation7 + $0x8] sm:$0xff]
        %v1314 = vld [vmem:[#allocation7 + $0x10] sm:$0xff]
        %v1315 = vld [vmem:[#allocation7 + $0x18] sm:$0xff]
        %v1316 = vpack.c.bf16 %v1314, %v1312
        %v1317 = vpack.c.bf16 %v1315, %v1313
        %v1318 = vld [vmem:[%s13] sm:$0xf]
        %v1319 = vld [vmem:[%s13 + $0x4] sm:$0xf]
        %v1322 = vunpack.c.l.b16 %v1318
        %v1323 = vunpack.c.l.b16 %v1319
        %v1324 = vpack.c.b16 %v1323, %v1322
        %1327 = vrot.lane.b32.xlu0 %v1316, 4
        %v1328 = vpop.permute.xlu0 %1327
        %1329 = vrot.lane.b32.xlu0 %v1317, 4
        %v1330 = vpop.permute.xlu0 %1329
        %v1331 = vsel %vm1194, %v1328, %v1330
        %v1334 = vsel %vm706, %v1324, 0
        %1336 = vmatprep.subr.bf16.mxu0 0
        %1337 = vmatpush1.bf16.msra.mxu0 0
        %1338 = vmatprep.subr.bf16.mxu0 0
        %1339 = vmatpush1.bf16.msra.mxu0 0
        %1340 = vmatprep.subr.bf16.mxu0 0
        %1341 = vmatpush1.bf16.msra.mxu0 0
        %1342 = vmatprep.subr.bf16.mxu0 0
        %1343 = vmatpush1.bf16.msra.mxu0 0
        %1344 = vmatprep.subr.bf16.mxu0 0
        %1345 = vmatpush1.bf16.msra.mxu0 0
        %1346 = vmatprep.subr.bf16.mxu0 0
        %1347 = vmatpush1.bf16.msra.mxu0 0
        %1348 = vmatprep.subr.bf16.mxu0 0
        %1349 = vmatpush1.bf16.msra.mxu0 0
        %1350 = vmatprep.subr.bf16.mxu0 0
        %1351 = vmatpush1.bf16.msra.mxu0 %v1331
        %1352 = vmatprep.subr.bf16.mxu0 0
        %1353 = vmatpush2.bf16.msra.mxu0 0
        %1354 = vmatprep.subr.bf16.mxu0 0
        %1355 = vmatpush2.bf16.msra.mxu0 0
        %1356 = vmatprep.subr.bf16.mxu0 0
        %1357 = vmatpush2.bf16.msra.mxu0 0
        %1358 = vmatprep.subr.bf16.mxu0 0
        %1359 = vmatpush2.bf16.msra.mxu0 0
        %1360 = vmatprep.subr.bf16.mxu0 0
        %1361 = vmatpush2.bf16.msra.mxu0 0
        %1362 = vmatprep.subr.bf16.mxu0 0
        %1363 = vmatpush2.bf16.msra.mxu0 0
        %1364 = vmatprep.subr.bf16.mxu0 0
        %1365 = vmatpush2.bf16.msra.mxu0 0
        %1366 = vmatprep.subr.bf16.mxu0 0
        %1367 = vmatpush2.bf16.msra.mxu0 0
        %1368 = vmatprep.mubr.bf16.mxu0 0
        %1369 = vmatmul.mubr.bf16.gmra.mxu0 %v1334
        %v1370 = vpop.f32.mrf.mxu0
        %v1371 = vadd.f32 0.0, %v1370
        %v1372 = vpop.f32.mrf.mxu0
        %v1373 = vpop.f32.mrf.mxu0
        %v1374 = vadd.f32 0.0, %v1373
        %v1375 = vpop.f32.mrf.mxu0
        %1376 = vdwg.mxu0
        %v1379 = vunpack.c.l.b16 %v1310
        %v1380 = vunpack.c.l.b16 %v1311
        %v1381 = vpack.c.b16 %v1380, %v1379
        %v1383 = vsel %vm706, %v1381, 0
        %1385 = vmatprep.subr.bf16.mxu0 0
        %1386 = vmatpush1.bf16.msra.mxu0 0
        %1387 = vmatprep.subr.bf16.mxu0 0
        %1388 = vmatpush1.bf16.msra.mxu0 0
        %1389 = vmatprep.subr.bf16.mxu0 0
        %1390 = vmatpush1.bf16.msra.mxu0 0
        %1391 = vmatprep.subr.bf16.mxu0 0
        %1392 = vmatpush1.bf16.msra.mxu0 0
        %1393 = vmatprep.subr.bf16.mxu0 0
        %1394 = vmatpush1.bf16.msra.mxu0 0
        %1395 = vmatprep.subr.bf16.mxu0 0
        %1396 = vmatpush1.bf16.msra.mxu0 0
        %1397 = vmatprep.subr.bf16.mxu0 0
        %1398 = vmatpush1.bf16.msra.mxu0 0
        %1399 = vmatprep.subr.bf16.mxu0 0
        %1400 = vmatpush1.bf16.msra.mxu0 %v1306
        %1401 = vmatprep.subr.bf16.mxu0 0
        %1402 = vmatpush2.bf16.msra.mxu0 0
        %1403 = vmatprep.subr.bf16.mxu0 0
        %1404 = vmatpush2.bf16.msra.mxu0 0
        %1405 = vmatprep.subr.bf16.mxu0 0
        %1406 = vmatpush2.bf16.msra.mxu0 0
        %1407 = vmatprep.subr.bf16.mxu0 0
        %1408 = vmatpush2.bf16.msra.mxu0 0
        %1409 = vmatprep.subr.bf16.mxu0 0
        %1410 = vmatpush2.bf16.msra.mxu0 0
        %1411 = vmatprep.subr.bf16.mxu0 0
        %1412 = vmatpush2.bf16.msra.mxu0 0
        %1413 = vmatprep.subr.bf16.mxu0 0
        %1414 = vmatpush2.bf16.msra.mxu0 0
        %1415 = vmatprep.subr.bf16.mxu0 0
        %1416 = vmatpush2.bf16.msra.mxu0 0
        %1417 = vmatprep.mubr.bf16.mxu0 0
        %1418 = vmatmul.mubr.bf16.gmra.mxu0 %v1383
        %v1419 = vpop.f32.mrf.mxu0
        %v1420 = vadd.f32 %v1371, %v1419
        %v1421 = vpop.f32.mrf.mxu0
        %v1422 = vpop.f32.mrf.mxu0
        %v1423 = vadd.f32 %v1374, %v1422
        %v1424 = vpop.f32.mrf.mxu0
        %1425 = vdwg.mxu0
        %v1426 = vld [vmem:[%s14] sm:$0xff]
        %v1427 = vld [vmem:[%s14 + $0x8] sm:$0xff]
        %1429 = vset.pattern.permute.xlu0 0
        %1430 = vperm.xlu0 %1429, %v1426
        %v1431 = vpop.permute.xlu0 %1430
        %1434 = vset.pattern.permute.xlu0 0
        %1435 = vperm.xlu0 %1434, %v1427
        %v1436 = vpop.permute.xlu0 %1435
        %v1438 = vadd.f32 %v1420, %v1431
        %v1439 = vadd.f32 %v1423, %v1436
        %v1440 = vmax.f32 %v1438, 0.0
        %v1441 = vmax.f32 %v1439, 0.0
        %v1442 = vadd.f32 %v1440, %v1162
        %v1443 = vadd.f32 %v1441, %v1163
        %v1444 = vmax.f32 %v1442, 0.0
        %v1445 = vmax.f32 %v1443, 0.0
        %vm1446 = vcmask 1048544
        %1447 = vst.msk [vmem:[#allocation6] sm:$0xff] %vm1446, %v1162
        %1448 = vst.msk [vmem:[#allocation6 + $0x10] sm:$0xff] %vm1446, %v1163
        %1449 = vst.msk [vmem:[#allocation7] sm:$0xff] %vm1446, %v1304
        %1450 = vst.msk [vmem:[#allocation7 + $0x10] sm:$0xff] %vm1446, %v1305
        %1451 = vst [vmem:[%s509] sm:$0xff] %v1444
        %1452 = vst [vmem:[%s509 + $0x8] sm:$0xff] %v1445
        %s1453 = sand.u32 %s373, 1
        %s1454 = scalar_lea.sflag [#allocation9], %s1453
        %s1455 = sand.u32 %s373, 1
        %s1456 = smul.addr %s1455, 16
        %s1457 = scalar_lea.vmem [#allocation8], %s1456
        // Predicated region
        $region85: #{tcn_forward.1} parent=79 // pred_check
          %p1458 = pneg %p383
        $region86: #{tcn_forward.1} parent=79 // pred_check_branch
          %1460 = sbr.rel (%p1458) target = $region88
        $region87: #{tcn_forward.1} parent=79 // pred_region
          %s1462 = ssub.s32 256, 256
          %1463 = vsyncadd %s1454, %s1462
          %s1464 = smul.addr %s33, 4
          %s1465 = sadd.s32 %s34, %s1464
          %s1466 = smul.addr %s1465, 128
          %s1467 = scalar_lea.hbm %s15, %s1466
          %s1468 = sshll.u32 %s1457, 4
          %s1469 = int_to_ptr.vmem [resolvable:$true] %s1468
          %1474 = dma.vmem_to_hbm [thread:$0]  %s1469, 256, %s1467, %s1454, 128, 256, 8
        $region88: #{tcn_forward.1} parent=79 // pred_fallthru
          _
      $region80: #{tcn_forward.1} parent=5 // pred_fallthru
        _
      %p1475 = scmp.le.s32.totalorder 2, %s24
      // Predicated region
      $region89: #{tcn_forward.1} parent=5 // pred_check
        %p1476 = pneg %p1475
      $region90: #{tcn_forward.1} parent=5 // pred_check_branch
        %1478 = sbr.rel (%p1476) target = $region92
      $region91: #{tcn_forward.1} parent=5 // pred_region
        %s1479 = ssub.s32 %s24, 2
        // Predicated region
        $region93: #{tcn_forward.1} parent=91 // pred_check
          %p1480 = pneg %p389
        $region94: #{tcn_forward.1} parent=91 // pred_check_branch
          %1482 = sbr.rel (%p1480) target = $region96
        $region95: #{tcn_forward.1} parent=91 // pred_region
          %s1483 = sand.u32 %s374, 1
          %s1484 = scalar_lea.sflag [#allocation9], %s1483
          %s1485 = sand.u32 %s374, 1
          %s1486 = smul.addr %s1485, 16
          %s1487 = scalar_lea.vmem [#allocation8], %s1486
          %1488 = dma.done %s1484, 256
        $region96: #{tcn_forward.1} parent=91 // pred_fallthru
          _
      $region92: #{tcn_forward.1} parent=5 // pred_fallthru
        _
    $region6: #{tcn_forward.1} parent=1 // loop_footer
      %s28 = sadd.s32 1, %s24
    $region7: #{tcn_forward.1} parent=1 // loop_footer_branch
      %23 = sbr.rel target = $region3
    $region8: #{tcn_forward.1} parent=1 // loop_exit
      _
    %1489 = vsyncpa [#allocation9], 1
    %s1490 = scalar_lea.sflag [#allocation9], 1
    %1491 = vsyncpa %s1490, 1

</llo_original>
